<compile_context>
chip_gen: v6e
topology: v6e:2x2x1
jax: 0.10.0
libtpu: 0.0.40
codegen_flags: <defaults>
</compile_context>

<pallas_src>
import functools

import numpy as np
import jax
import jax.numpy as jnp
from jax.experimental import pallas as pl
from jax.experimental.pallas import tpu as pltpu


# ------------------------------ fused kernel -------------------------------


def _glstm_round_kernel(nmask_ref, emask_ref, x_ref, px_ref, gc_ref, sp_ref,
                        w_iou_ref, u_iou_ref, bw_ref, bu_ref,
                        w_f_ref, u_f_ref, bf_ref,
                        h_ref, c_ref, hsum_ref, *, HP):
    """One round of the tree-GLSTM update; state (h, c, h_sum) stays in VMEM."""
    r = pl.program_id(0)

    @pl.when(r == 0)
    def _init():
        h_ref[...] = jnp.zeros_like(h_ref)
        c_ref[...] = jnp.zeros_like(c_ref)
        hsum_ref[...] = jnp.zeros_like(hsum_ref)

    nmask = nmask_ref[0]          # (N, 1)  node_order == r
    emask = emask_ref[0]          # (E, 1)  edge_order == r
    h_old = h_ref[...]            # (N, HP)
    c_old = c_ref[...]            # (N, HP)
    gc = gc_ref[...]              # (E, N) one-hot child gather
    sp = sp_ref[...]              # (N, E) one-hot parent scatter

    # gather child rows of h / c via one-hot matmuls (MXU)
    child_h = jnp.dot(gc, h_old, preferred_element_type=jnp.float32)   # (E, HP)
    child_c = jnp.dot(gc, c_old, preferred_element_type=jnp.float32)   # (E, HP)

    # h_sum[parent] += h[child] over this round's edges (before the iou gates)
    hsum_new = hsum_ref[...] + jnp.dot(sp, emask * child_h,
                                       preferred_element_type=jnp.float32)
    hsum_ref[...] = hsum_new

    # iou = x @ W_iou + b_W  (+ h_sum @ U_iou + b_U for r > 0; h_sum == 0 at r == 0)
    use_u = (r > 0).astype(jnp.float32)
    iou = (jnp.dot(x_ref[...], w_iou_ref[...], preferred_element_type=jnp.float32)
           + jnp.dot(hsum_new, u_iou_ref[...], preferred_element_type=jnp.float32)
           + bw_ref[...] + use_u * bu_ref[...])
    # gate slices land on 128-lane vreg boundaries (HP multiple of 128)
    i_g = jax.nn.sigmoid(iou[:, 0:HP])
    o_g = jax.nn.sigmoid(iou[:, HP:2 * HP])
    u_g = jnp.tanh(iou[:, 2 * HP:3 * HP])

    # c[node_mask] = i * u  (masked overwrite, as in the reference)
    c_new = nmask * (i_g * u_g) + (1.0 - nmask) * c_old

    # f gate over edges; scatter fc into parents of this round's edges
    f = jax.nn.sigmoid(
        jnp.dot(px_ref[...], w_f_ref[...], preferred_element_type=jnp.float32)
        + jnp.dot(child_h, u_f_ref[...], preferred_element_type=jnp.float32)
        + bf_ref[...])
    fc = emask * (f * child_c)
    c_new = c_new + jnp.dot(sp, fc, preferred_element_type=jnp.float32)
    c_ref[...] = c_new

    # h[node_mask] = o * tanh(c)
    h_ref[...] = nmask * (o_g * jnp.tanh(c_new)) + (1.0 - nmask) * h_old


# --------------------------- padding helpers --------------------------------


def _pad_last(a, new_last):
    pad = new_last - a.shape[-1]
    if pad == 0:
        return a
    return jnp.concatenate([a, jnp.zeros(a.shape[:-1] + (pad,), a.dtype)], axis=-1)


def _pad_rows(a, new_rows):
    pad = new_rows - a.shape[0]
    if pad == 0:
        return a
    return jnp.concatenate([a, jnp.zeros((pad,) + a.shape[1:], a.dtype)], axis=0)


def _pad_gate_cols(w, H, HP, ngates=3):
    """(..., ngates*H) -> (..., ngates*HP), each gate block zero-padded to HP."""
    parts = [_pad_last(w[..., g * H:(g + 1) * H], HP) for g in range(ngates)]
    return jnp.concatenate(parts, axis=-1)


# ------------------------------- GLSTM module -------------------------------


class GLSTMPallas:
    def __init__(self, in_features, out_features, key):
        self.in_features = in_features
        self.out_features = out_features
        H = out_features
        self.HP = HP = pl.cdiv(H, 128) * 128   # per-gate width padded to a lane multiple

        ks = jax.random.split(key, 8)
        s = 0.1
        # raw weights stored [in, out] (transposed w.r.t. torch Linear.weight)
        W_iou = (jax.random.normal(ks[0], (in_features, 3 * H)) * s).astype(jnp.float32)
        b_Wiou = (jax.random.normal(ks[1], (1, 3 * H)) * s).astype(jnp.float32)
        U_iou = (jax.random.normal(ks[2], (H, 3 * H)) * s).astype(jnp.float32)
        b_Uiou = (jax.random.normal(ks[3], (1, 3 * H)) * s).astype(jnp.float32)
        W_f = (jax.random.normal(ks[4], (in_features, H)) * s).astype(jnp.float32)
        b_Wf = (jax.random.normal(ks[5], (1, H)) * s).astype(jnp.float32)
        U_f = (jax.random.normal(ks[6], (H, H)) * s).astype(jnp.float32)
        b_Uf = (jax.random.normal(ks[7], (1, H)) * s).astype(jnp.float32)

        self._raw = dict(W_iou=W_iou, b_Wiou=b_Wiou, U_iou=U_iou, b_Uiou=b_Uiou,
                         W_f=W_f, b_Wf=b_Wf, U_f=U_f, b_Uf=b_Uf)

        # lane-aligned padded parameter layout used by the fused kernel
        self.W_iou = _pad_gate_cols(W_iou, H, HP)                   # (Fin, 3*HP)
        self.U_iou = _pad_rows(_pad_gate_cols(U_iou, H, HP), HP)    # (HP,  3*HP)
        self.b_Wiou = _pad_gate_cols(b_Wiou, H, HP)                 # (1,   3*HP)
        self.b_Uiou = _pad_gate_cols(b_Uiou, H, HP)                 # (1,   3*HP)
        self.W_f = _pad_last(W_f, HP)                               # (Fin, HP)
        self.U_f = _pad_rows(_pad_last(U_f, HP), HP)                # (HP,  HP)
        self.b_f = _pad_last(b_Wf + b_Uf, HP)                       # (1,   HP) combined

    def raw_params(self):
        return self._raw

    def __call__(self, x, edge_index, edge_feats, edge_types):
        # edge_feats / edge_types are unused in the default configuration
        # (typed_hidden_rep=False, full_param=False); kept for signature parity.
        del edge_feats, edge_types
        N = x.shape[0]
        H, HP, Fin = self.out_features, self.HP, self.in_features
        x = x.astype(jnp.float32)

        # ---- host-side graph bookkeeping (mirrors the torch python loop) ----
        adjacency = np.asarray(edge_index).T            # [E, 2] rows = (parent, child)
        E = adjacency.shape[0]
        node_order = np.zeros(N, dtype=np.int32)
        edge_order = np.zeros(E, dtype=np.int32)
        for i in range(E):
            p = int(adjacency[i, 0])
            node_order[p] += 1
            edge_order[i] = node_order[p]
        R = int(node_order.max()) + 1

        rounds = np.arange(R, dtype=np.int32)
        nmask = jnp.asarray((node_order[None, :] == rounds[:, None])
                            .astype(np.float32)[:, :, None])        # (R, N, 1)
        emask = jnp.asarray((edge_order[None, :] == rounds[:, None])
                            .astype(np.float32)[:, :, None])        # (R, E, 1)

        parents = jnp.asarray(adjacency[:, 0], dtype=jnp.int32)
        children = jnp.asarray(adjacency[:, 1], dtype=jnp.int32)
        gc = jax.nn.one_hot(children, N, dtype=jnp.float32)          # (E, N) gather h/c[child]
        sp = jax.nn.one_hot(parents, N, dtype=jnp.float32).T         # (N, E) scatter-add -> parent
        px = jnp.take(x, parents, axis=0)                            # (E, Fin) = x[parents]

        kernel = functools.partial(_glstm_round_kernel, HP=HP)

        def pinned(shape):
            return pl.BlockSpec(shape, lambda r: (0,) * len(shape))

        h_pad, c_pad = pl.pallas_call(
            kernel,
            grid=(R,),
            in_specs=[
                pl.BlockSpec((1, N, 1), lambda r: (r, 0, 0)),   # node mask of round r
                pl.BlockSpec((1, E, 1), lambda r: (r, 0, 0)),   # edge mask of round r
                pinned((N, Fin)),        # x
                pinned((E, Fin)),        # x[parents]
                pinned((E, N)),          # child gather one-hot
                pinned((N, E)),          # parent scatter one-hot
                pinned((Fin, 3 * HP)),   # W_iou
                pinned((HP, 3 * HP)),    # U_iou
                pinned((1, 3 * HP)),     # b_Wiou
                pinned((1, 3 * HP)),     # b_Uiou
                pinned((Fin, HP)),       # W_f
                pinned((HP, HP)),        # U_f
                pinned((1, HP)),         # b_Wf + b_Uf
            ],
            out_shape=(jax.ShapeDtypeStruct((N, HP), jnp.float32),
                       jax.ShapeDtypeStruct((N, HP), jnp.float32)),
            out_specs=(pinned((N, HP)), pinned((N, HP))),
            scratch_shapes=[pltpu.VMEM((N, HP), jnp.float32)],       # h_sum (persists)
            compiler_params=pltpu.CompilerParams(
                dimension_semantics=("arbitrary",)),
        )(nmask, emask, x, px, gc, sp,
          self.W_iou, self.U_iou, self.b_Wiou, self.b_Uiou,
          self.W_f, self.U_f, self.b_f)

        return {"h": h_pad[:, :H], "c": c_pad[:, :H]}


# ----------------------- NumPy reference (torch port) -----------------------


def _glstm_reference_numpy(x, edge_index, raw, H):
    x = np.asarray(x, dtype=np.float64)
    adjacency = np.asarray(edge_index).T
    N, E = x.shape[0], adjacency.shape[0]
    node_order = np.zeros(N, dtype=np.int64)
    edge_order = np.zeros(E, dtype=np.int64)
    for i in range(E):
        p = int(adjacency[i, 0])
        node_order[p] += 1
        edge_order[i] = node_order[p]

    W_iou = np.asarray(raw["W_iou"], np.float64); b_Wiou = np.asarray(raw["b_Wiou"], np.float64)
    U_iou = np.asarray(raw["U_iou"], np.float64); b_Uiou = np.asarray(raw["b_Uiou"], np.float64)
    W_f = np.asarray(raw["W_f"], np.float64); b_Wf = np.asarray(raw["b_Wf"], np.float64)
    U_f = np.asarray(raw["U_f"], np.float64); b_Uf = np.asarray(raw["b_Uf"], np.float64)

    def sigmoid(z):
        return 1.0 / (1.0 + np.exp(-z))

    h = np.zeros((N, H)); c = np.zeros((N, H)); h_sum = np.zeros((N, H))
    for n in range(int(node_order.max()) + 1):
        node_mask = node_order == n
        edge_mask = edge_order == n
        xm = x[node_mask]
        if n == 0:
            iou = xm @ W_iou + b_Wiou
        else:
            adj = adjacency[edge_mask]
            p_idx = adj[:, 0]; c_idx = adj[:, 1]
            child_h = h[c_idx].copy(); child_c = c[c_idx].copy()
            for pi, ci in zip(p_idx, c_idx):
                h_sum[pi] += h[ci]
            iou = xm @ W_iou + b_Wiou + h_sum[node_mask] @ U_iou + b_Uiou
        i = sigmoid(iou[:, :H]); o = sigmoid(iou[:, H:2 * H]); u = np.tanh(iou[:, 2 * H:])
        c[node_mask] = i * u
        if n > 0:
            f = sigmoid(x[p_idx] @ W_f + b_Wf + child_h @ U_f + b_Uf)
            fc = f * child_c
            for k, pi in enumerate(p_idx):
                c[pi] += fc[k]
        h[node_mask] = o * np.tanh(c[node_mask])
    return h, c


# ---------------------------------- main -------------------------------------


if __name__ == "__main__":
    key = jax.random.PRNGKey(0)
    k_x, k_p, k_c, k_t, k_f, k_w = jax.random.split(key, 6)

    N, Fin, H, E = 16, 16, 32, 24
    x = jax.random.normal(k_x, (N, Fin), dtype=jnp.float32)
    parents = jax.random.randint(k_p, (E,), 0, N, dtype=jnp.int32)
    children = jax.random.randint(k_c, (E,), 0, N, dtype=jnp.int32)
    edge_index = jnp.stack([parents, children], axis=0)                 # [2, E]
    edge_type_idx = jax.random.randint(k_t, (E,), 0, 10)
    edge_types = jax.nn.one_hot(edge_type_idx, 10, dtype=jnp.float32)   # [E, 10] (unused)
    edge_feats = jax.random.normal(k_f, (10, Fin), dtype=jnp.float32)   # unused (default cfg)

    model = GLSTMPallas(Fin, H, k_w)
    out = model(x, edge_index, edge_feats, edge_types)
    h = jax.block_until_ready(out["h"])
    c = jax.block_until_ready(out["c"])

    h_np = np.asarray(h)
    c_np = np.asarray(c)
    assert np.isfinite(h_np).all(), "h has inf or nan"
    assert np.isfinite(c_np).all(), "c has inf or nan"
    assert h_np.shape == (N, H) and c_np.shape == (N, H)

    # loose cross-check against a NumPy port of the PyTorch loop
    # (loose threshold tolerates MXU matmul precision differences)
    h_ref, c_ref = _glstm_reference_numpy(x, edge_index, model.raw_params(), H)
    assert np.max(np.abs(h_np - h_ref)) < 5e-2, "h mismatch vs reference"
    assert np.max(np.abs(c_np - c_ref)) < 5e-2, "c mismatch vs reference"

    print("KERNEL_OK")
</pallas_src>

<mosaic_0001>
module attributes {stable_mosaic.version = 11 : i64} {
  func.func @_glstm_round_kernel(%arg0: i32, %arg1: memref<1x16x1xf32, #tpu.memory_space<vmem>>, %arg2: memref<1x24x1xf32, #tpu.memory_space<vmem>>, %arg3: memref<16x16xf32, #tpu.memory_space<vmem>>, %arg4: memref<24x16xf32, #tpu.memory_space<vmem>>, %arg5: memref<24x16xf32, #tpu.memory_space<vmem>>, %arg6: memref<16x24xf32, #tpu.memory_space<vmem>>, %arg7: memref<16x384xf32, #tpu.memory_space<vmem>>, %arg8: memref<128x384xf32, #tpu.memory_space<vmem>>, %arg9: memref<1x384xf32, #tpu.memory_space<vmem>>, %arg10: memref<1x384xf32, #tpu.memory_space<vmem>>, %arg11: memref<16x128xf32, #tpu.memory_space<vmem>>, %arg12: memref<128x128xf32, #tpu.memory_space<vmem>>, %arg13: memref<1x128xf32, #tpu.memory_space<vmem>>, %arg14: memref<16x128xf32, #tpu.memory_space<vmem>>, %arg15: memref<16x128xf32, #tpu.memory_space<vmem>>, %arg16: memref<16x128xf32, #tpu.memory_space<vmem>>) attributes {dimension_semantics = [#tpu.dimension_semantics<arbitrary>], iteration_bounds = array<i64: 5>, scalar_prefetch = 0 : i64, scratch_operands = 1 : i64, tpu.core_type = #tpu.core_type<tc>, window_params = [{transform_indices = @transform_0, window_bounds = array<i64: 1, 16, 1>}, {transform_indices = @transform_1, window_bounds = array<i64: 1, 24, 1>}, {pipeline_mode = #tpu.pipeline_mode<synchronous>, transform_indices = @transform_2, window_bounds = array<i64: 16, 16>}, {pipeline_mode = #tpu.pipeline_mode<synchronous>, transform_indices = @transform_3, window_bounds = array<i64: 24, 16>}, {pipeline_mode = #tpu.pipeline_mode<synchronous>, transform_indices = @transform_4, window_bounds = array<i64: 24, 16>}, {pipeline_mode = #tpu.pipeline_mode<synchronous>, transform_indices = @transform_5, window_bounds = array<i64: 16, 24>}, {pipeline_mode = #tpu.pipeline_mode<synchronous>, transform_indices = @transform_6, window_bounds = array<i64: 16, 384>}, {pipeline_mode = #tpu.pipeline_mode<synchronous>, transform_indices = @transform_7, window_bounds = array<i64: 128, 384>}, {pipeline_mode = #tpu.pipeline_mode<synchronous>, transform_indices = @transform_8, window_bounds = array<i64: 1, 384>}, {pipeline_mode = #tpu.pipeline_mode<synchronous>, transform_indices = @transform_9, window_bounds = array<i64: 1, 384>}, {pipeline_mode = #tpu.pipeline_mode<synchronous>, transform_indices = @transform_10, window_bounds = array<i64: 16, 128>}, {pipeline_mode = #tpu.pipeline_mode<synchronous>, transform_indices = @transform_11, window_bounds = array<i64: 128, 128>}, {pipeline_mode = #tpu.pipeline_mode<synchronous>, transform_indices = @transform_12, window_bounds = array<i64: 1, 128>}, {pipeline_mode = #tpu.pipeline_mode<synchronous>, transform_indices = @transform_13, window_bounds = array<i64: 16, 128>}, {pipeline_mode = #tpu.pipeline_mode<synchronous>, transform_indices = @transform_14, window_bounds = array<i64: 16, 128>}]} {
    %c0_i32 = arith.constant 0 : i32
    %0 = arith.cmpi eq, %arg0, %c0_i32 : i32
    %1 = arith.extui %0 : i1 to i32
    %c0_i32_0 = arith.constant 0 : i32
    %2 = arith.cmpi ne, %1, %c0_i32_0 : i32
    scf.if %2 {
      %cst_53 = arith.constant 0.000000e+00 : f32
      %88 = vector.broadcast %cst_53 : f32 to vector<16x128xf32>
      %c0_54 = arith.constant 0 : index
      %c0_55 = arith.constant 0 : index
      %89 = vector.load %arg14[%c0_54, %c0_55] : memref<16x128xf32, #tpu.memory_space<vmem>>, vector<16x128xf32>
      tpu.vector_store %arg14[%c0_54, %c0_55], %88 {strides = array<i32>} : memref<16x128xf32, #tpu.memory_space<vmem>>, vector<16x128xf32>,
      %cst_56 = arith.constant 0.000000e+00 : f32
      %90 = vector.broadcast %cst_56 : f32 to vector<16x128xf32>
      %c0_57 = arith.constant 0 : index
      %c0_58 = arith.constant 0 : index
      %91 = vector.load %arg15[%c0_57, %c0_58] : memref<16x128xf32, #tpu.memory_space<vmem>>, vector<16x128xf32>
      tpu.vector_store %arg15[%c0_57, %c0_58], %90 {strides = array<i32>} : memref<16x128xf32, #tpu.memory_space<vmem>>, vector<16x128xf32>,
      %cst_59 = arith.constant 0.000000e+00 : f32
      %92 = vector.broadcast %cst_59 : f32 to vector<16x128xf32>
      %c0_60 = arith.constant 0 : index
      %c0_61 = arith.constant 0 : index
      %93 = vector.load %arg16[%c0_60, %c0_61] : memref<16x128xf32, #tpu.memory_space<vmem>>, vector<16x128xf32>
      tpu.vector_store %arg16[%c0_60, %c0_61], %92 {strides = array<i32>} : memref<16x128xf32, #tpu.memory_space<vmem>>, vector<16x128xf32>,
    } else {
    }
    %c0 = arith.constant 0 : index
    %c0_1 = arith.constant 0 : index
    %c0_2 = arith.constant 0 : index
    %3 = vector.load %arg1[%c0, %c0_1, %c0_2] : memref<1x16x1xf32, #tpu.memory_space<vmem>>, vector<1x16x1xf32>
    %4 = vector.shape_cast %3 : vector<1x16x1xf32> to vector<16x1xf32>
    %c0_3 = arith.constant 0 : index
    %c0_4 = arith.constant 0 : index
    %c0_5 = arith.constant 0 : index
    %5 = vector.load %arg2[%c0_3, %c0_4, %c0_5] : memref<1x24x1xf32, #tpu.memory_space<vmem>>, vector<1x24x1xf32>
    %6 = vector.shape_cast %5 : vector<1x24x1xf32> to vector<24x1xf32>
    %c0_6 = arith.constant 0 : index
    %c0_7 = arith.constant 0 : index
    %7 = vector.load %arg14[%c0_6, %c0_7] : memref<16x128xf32, #tpu.memory_space<vmem>>, vector<16x128xf32>
    %c0_8 = arith.constant 0 : index
    %c0_9 = arith.constant 0 : index
    %8 = vector.load %arg15[%c0_8, %c0_9] : memref<16x128xf32, #tpu.memory_space<vmem>>, vector<16x128xf32>
    %c0_10 = arith.constant 0 : index
    %c0_11 = arith.constant 0 : index
    %9 = vector.load %arg5[%c0_10, %c0_11] : memref<24x16xf32, #tpu.memory_space<vmem>>, vector<24x16xf32>
    %c0_12 = arith.constant 0 : index
    %c0_13 = arith.constant 0 : index
    %10 = vector.load %arg6[%c0_12, %c0_13] : memref<16x24xf32, #tpu.memory_space<vmem>>, vector<16x24xf32>
    %cst = arith.constant dense<0.000000e+00> : vector<24x128xf32>
    %11 = tpu.matmul %9, %7, %cst {dimension_numbers = #tpu.dot_dimension_numbers<[1], [0], [0], [1], [0, 0, 1, 1], [], []>} : vector<24x16xf32>, vector<16x128xf32>, vector<24x128xf32> -> vector<24x128xf32>
    %cst_14 = arith.constant dense<0.000000e+00> : vector<24x128xf32>
    %12 = tpu.matmul %9, %8, %cst_14 {dimension_numbers = #tpu.dot_dimension_numbers<[1], [0], [0], [1], [0, 0, 1, 1], [], []>} : vector<24x16xf32>, vector<16x128xf32>, vector<24x128xf32> -> vector<24x128xf32>
    %c0_15 = arith.constant 0 : index
    %c0_16 = arith.constant 0 : index
    %13 = vector.load %arg16[%c0_15, %c0_16] : memref<16x128xf32, #tpu.memory_space<vmem>>, vector<16x128xf32>
    %14 = vector.broadcast %6 : vector<24x1xf32> to vector<24x128xf32>
    %15 = arith.mulf %14, %11 : vector<24x128xf32>
    %cst_17 = arith.constant dense<0.000000e+00> : vector<16x128xf32>
    %16 = tpu.matmul %10, %15, %cst_17 {dimension_numbers = #tpu.dot_dimension_numbers<[1], [0], [0], [1], [0, 0, 1, 1], [], []>} : vector<16x24xf32>, vector<24x128xf32>, vector<16x128xf32> -> vector<16x128xf32>
    %17 = arith.addf %13, %16 : vector<16x128xf32>
    %c0_18 = arith.constant 0 : index
    %c0_19 = arith.constant 0 : index
    %18 = vector.load %arg16[%c0_18, %c0_19] : memref<16x128xf32, #tpu.memory_space<vmem>>, vector<16x128xf32>
    tpu.vector_store %arg16[%c0_18, %c0_19], %17 {strides = array<i32>} : memref<16x128xf32, #tpu.memory_space<vmem>>, vector<16x128xf32>,
    %c0_i32_20 = arith.constant 0 : i32
    %19 = arith.cmpi sgt, %arg0, %c0_i32_20 : i32
    %20 = arith.extui %19 : i1 to i32
    %21 = arith.sitofp %20 : i32 to f32
    %c0_21 = arith.constant 0 : index
    %c0_22 = arith.constant 0 : index
    %22 = vector.load %arg3[%c0_21, %c0_22] : memref<16x16xf32, #tpu.memory_space<vmem>>, vector<16x16xf32>
    %c0_23 = arith.constant 0 : index
    %c0_24 = arith.constant 0 : index
    %23 = vector.load %arg7[%c0_23, %c0_24] : memref<16x384xf32, #tpu.memory_space<vmem>>, vector<16x384xf32>
    %cst_25 = arith.constant dense<0.000000e+00> : vector<16x384xf32>
    %24 = tpu.matmul %22, %23, %cst_25 {dimension_numbers = #tpu.dot_dimension_numbers<[1], [0], [0], [1], [0, 0, 1, 1], [], []>} : vector<16x16xf32>, vector<16x384xf32>, vector<16x384xf32> -> vector<16x384xf32>
    %c0_26 = arith.constant 0 : index
    %c0_27 = arith.constant 0 : index
    %25 = vector.load %arg8[%c0_26, %c0_27] : memref<128x384xf32, #tpu.memory_space<vmem>>, vector<128x384xf32>
    %cst_28 = arith.constant dense<0.000000e+00> : vector<16x384xf32>
    %26 = tpu.matmul %17, %25, %cst_28 {dimension_numbers = #tpu.dot_dimension_numbers<[1], [0], [0], [1], [0, 0, 1, 1], [], []>} : vector<16x128xf32>, vector<128x384xf32>, vector<16x384xf32> -> vector<16x384xf32>
    %27 = arith.addf %24, %26 : vector<16x384xf32>
    %c0_29 = arith.constant 0 : index
    %c0_30 = arith.constant 0 : index
    %28 = vector.load %arg9[%c0_29, %c0_30] : memref<1x384xf32, #tpu.memory_space<vmem>>, vector<1x384xf32>
    %29 = vector.broadcast %28 : vector<1x384xf32> to vector<16x384xf32>
    %30 = arith.addf %27, %29 : vector<16x384xf32>
    %c0_31 = arith.constant 0 : index
    %c0_32 = arith.constant 0 : index
    %31 = vector.load %arg10[%c0_31, %c0_32] : memref<1x384xf32, #tpu.memory_space<vmem>>, vector<1x384xf32>
    %32 = vector.broadcast %21 : f32 to vector<1x384xf32>
    %33 = arith.mulf %32, %31 : vector<1x384xf32>
    %34 = vector.broadcast %33 : vector<1x384xf32> to vector<16x384xf32>
    %35 = arith.addf %30, %34 : vector<16x384xf32>
    %36 = vector.extract_strided_slice %35 {offsets = [0, 0], sizes = [16, 128], strides = [1, 1]} : vector<16x384xf32> to vector<16x128xf32>
    %37 = arith.negf %36 : vector<16x128xf32>
    %38 = math.exp %37 : vector<16x128xf32>
    %cst_33 = arith.constant 1.000000e+00 : f32
    %39 = vector.broadcast %cst_33 : f32 to vector<16x128xf32>
    %40 = arith.addf %39, %38 : vector<16x128xf32>
    %41 = arith.divf %39, %40 : vector<16x128xf32>
    %42 = vector.extract_strided_slice %35 {offsets = [0, 128], sizes = [16, 128], strides = [1, 1]} : vector<16x384xf32> to vector<16x128xf32>
    %43 = arith.negf %42 : vector<16x128xf32>
    %44 = math.exp %43 : vector<16x128xf32>
    %cst_34 = arith.constant 1.000000e+00 : f32
    %45 = vector.broadcast %cst_34 : f32 to vector<16x128xf32>
    %46 = arith.addf %45, %44 : vector<16x128xf32>
    %47 = arith.divf %45, %46 : vector<16x128xf32>
    %48 = vector.extract_strided_slice %35 {offsets = [0, 256], sizes = [16, 128], strides = [1, 1]} : vector<16x384xf32> to vector<16x128xf32>
    %49 = math.tanh %48 : vector<16x128xf32>
    %50 = arith.mulf %41, %49 : vector<16x128xf32>
    %51 = vector.broadcast %4 : vector<16x1xf32> to vector<16x128xf32>
    %52 = arith.mulf %51, %50 : vector<16x128xf32>
    %cst_35 = arith.constant 1.000000e+00 : f32
    %53 = vector.broadcast %cst_35 : f32 to vector<16x1xf32>
    %54 = arith.subf %53, %4 : vector<16x1xf32>
    %55 = vector.broadcast %54 : vector<16x1xf32> to vector<16x128xf32>
    %56 = arith.mulf %55, %8 : vector<16x128xf32>
    %57 = arith.addf %52, %56 : vector<16x128xf32>
    %c0_36 = arith.constant 0 : index
    %c0_37 = arith.constant 0 : index
    %58 = vector.load %arg4[%c0_36, %c0_37] : memref<24x16xf32, #tpu.memory_space<vmem>>, vector<24x16xf32>
    %c0_38 = arith.constant 0 : index
    %c0_39 = arith.constant 0 : index
    %59 = vector.load %arg11[%c0_38, %c0_39] : memref<16x128xf32, #tpu.memory_space<vmem>>, vector<16x128xf32>
    %cst_40 = arith.constant dense<0.000000e+00> : vector<24x128xf32>
    %60 = tpu.matmul %58, %59, %cst_40 {dimension_numbers = #tpu.dot_dimension_numbers<[1], [0], [0], [1], [0, 0, 1, 1], [], []>} : vector<24x16xf32>, vector<16x128xf32>, vector<24x128xf32> -> vector<24x128xf32>
    %c0_41 = arith.constant 0 : index
    %c0_42 = arith.constant 0 : index
    %61 = vector.load %arg12[%c0_41, %c0_42] : memref<128x128xf32, #tpu.memory_space<vmem>>, vector<128x128xf32>
    %cst_43 = arith.constant dense<0.000000e+00> : vector<24x128xf32>
    %62 = tpu.matmul %11, %61, %cst_43 {dimension_numbers = #tpu.dot_dimension_numbers<[1], [0], [0], [1], [0, 0, 1, 1], [], []>} : vector<24x128xf32>, vector<128x128xf32>, vector<24x128xf32> -> vector<24x128xf32>
    %63 = arith.addf %60, %62 : vector<24x128xf32>
    %c0_44 = arith.constant 0 : index
    %c0_45 = arith.constant 0 : index
    %64 = vector.load %arg13[%c0_44, %c0_45] : memref<1x128xf32, #tpu.memory_space<vmem>>, vector<1x128xf32>
    %65 = vector.broadcast %64 : vector<1x128xf32> to vector<24x128xf32>
    %66 = arith.addf %63, %65 : vector<24x128xf32>
    %67 = arith.negf %66 : vector<24x128xf32>
    %68 = math.exp %67 : vector<24x128xf32>
    %cst_46 = arith.constant 1.000000e+00 : f32
    %69 = vector.broadcast %cst_46 : f32 to vector<24x128xf32>
    %70 = arith.addf %69, %68 : vector<24x128xf32>
    %71 = arith.divf %69, %70 : vector<24x128xf32>
    %72 = arith.mulf %71, %12 : vector<24x128xf32>
    %73 = vector.broadcast %6 : vector<24x1xf32> to vector<24x128xf32>
    %74 = arith.mulf %73, %72 : vector<24x128xf32>
    %cst_47 = arith.constant dense<0.000000e+00> : vector<16x128xf32>
    %75 = tpu.matmul %10, %74, %cst_47 {dimension_numbers = #tpu.dot_dimension_numbers<[1], [0], [0], [1], [0, 0, 1, 1], [], []>} : vector<16x24xf32>, vector<24x128xf32>, vector<16x128xf32> -> vector<16x128xf32>
    %76 = arith.addf %57, %75 : vector<16x128xf32>
    %c0_48 = arith.constant 0 : index
    %c0_49 = arith.constant 0 : index
    %77 = vector.load %arg15[%c0_48, %c0_49] : memref<16x128xf32, #tpu.memory_space<vmem>>, vector<16x128xf32>
    tpu.vector_store %arg15[%c0_48, %c0_49], %76 {strides = array<i32>} : memref<16x128xf32, #tpu.memory_space<vmem>>, vector<16x128xf32>,
    %78 = math.tanh %76 : vector<16x128xf32>
    %79 = arith.mulf %47, %78 : vector<16x128xf32>
    %80 = vector.broadcast %4 : vector<16x1xf32> to vector<16x128xf32>
    %81 = arith.mulf %80, %79 : vector<16x128xf32>
    %cst_50 = arith.constant 1.000000e+00 : f32
    %82 = vector.broadcast %cst_50 : f32 to vector<16x1xf32>
    %83 = arith.subf %82, %4 : vector<16x1xf32>
    %84 = vector.broadcast %83 : vector<16x1xf32> to vector<16x128xf32>
    %85 = arith.mulf %84, %7 : vector<16x128xf32>
    %86 = arith.addf %81, %85 : vector<16x128xf32>
    %c0_51 = arith.constant 0 : index
    %c0_52 = arith.constant 0 : index
    %87 = vector.load %arg14[%c0_51, %c0_52] : memref<16x128xf32, #tpu.memory_space<vmem>>, vector<16x128xf32>
    tpu.vector_store %arg14[%c0_51, %c0_52], %86 {strides = array<i32>} : memref<16x128xf32, #tpu.memory_space<vmem>>, vector<16x128xf32>,
    return
  }
  func.func @transform_0(%arg0: i32) -> (i32, i32, i32) {
    %c0_i32 = arith.constant 0 : i32
    %c0_i32_0 = arith.constant 0 : i32
    %c0_i32_1 = arith.constant 0 : i32
    return %arg0, %c0_i32, %c0_i32_0 : i32, i32, i32
  }
  func.func @transform_1(%arg0: i32) -> (i32, i32, i32) {
    %c0_i32 = arith.constant 0 : i32
    %c0_i32_0 = arith.constant 0 : i32
    %c0_i32_1 = arith.constant 0 : i32
    return %arg0, %c0_i32, %c0_i32_0 : i32, i32, i32
  }
  func.func @transform_2(%arg0: i32) -> (i32, i32) {
    %c0_i32 = arith.constant 0 : i32
    %c0_i32_0 = arith.constant 0 : i32
    %c0_i32_1 = arith.constant 0 : i32
    return %c0_i32, %c0_i32_0 : i32, i32
  }
  func.func @transform_3(%arg0: i32) -> (i32, i32) {
    %c0_i32 = arith.constant 0 : i32
    %c0_i32_0 = arith.constant 0 : i32
    %c0_i32_1 = arith.constant 0 : i32
    return %c0_i32, %c0_i32_0 : i32, i32
  }
  func.func @transform_4(%arg0: i32) -> (i32, i32) {
    %c0_i32 = arith.constant 0 : i32
    %c0_i32_0 = arith.constant 0 : i32
    %c0_i32_1 = arith.constant 0 : i32
    return %c0_i32, %c0_i32_0 : i32, i32
  }
  func.func @transform_5(%arg0: i32) -> (i32, i32) {
    %c0_i32 = arith.constant 0 : i32
    %c0_i32_0 = arith.constant 0 : i32
    %c0_i32_1 = arith.constant 0 : i32
    return %c0_i32, %c0_i32_0 : i32, i32
  }
  func.func @transform_6(%arg0: i32) -> (i32, i32) {
    %c0_i32 = arith.constant 0 : i32
    %c0_i32_0 = arith.constant 0 : i32
    %c0_i32_1 = arith.constant 0 : i32
    return %c0_i32, %c0_i32_0 : i32, i32
  }
  func.func @transform_7(%arg0: i32) -> (i32, i32) {
    %c0_i32 = arith.constant 0 : i32
    %c0_i32_0 = arith.constant 0 : i32
    %c0_i32_1 = arith.constant 0 : i32
    return %c0_i32, %c0_i32_0 : i32, i32
  }
  func.func @transform_8(%arg0: i32) -> (i32, i32) {
    %c0_i32 = arith.constant 0 : i32
    %c0_i32_0 = arith.constant 0 : i32
    %c0_i32_1 = arith.constant 0 : i32
    return %c0_i32, %c0_i32_0 : i32, i32
  }
  func.func @transform_9(%arg0: i32) -> (i32, i32) {
    %c0_i32 = arith.constant 0 : i32
    %c0_i32_0 = arith.constant 0 : i32
    %c0_i32_1 = arith.constant 0 : i32
    return %c0_i32, %c0_i32_0 : i32, i32
  }
  func.func @transform_10(%arg0: i32) -> (i32, i32) {
    %c0_i32 = arith.constant 0 : i32
    %c0_i32_0 = arith.constant 0 : i32
    %c0_i32_1 = arith.constant 0 : i32
    return %c0_i32, %c0_i32_0 : i32, i32
  }
  func.func @transform_11(%arg0: i32) -> (i32, i32) {
    %c0_i32 = arith.constant 0 : i32
    %c0_i32_0 = arith.constant 0 : i32
    %c0_i32_1 = arith.constant 0 : i32
    return %c0_i32, %c0_i32_0 : i32, i32
  }
  func.func @transform_12(%arg0: i32) -> (i32, i32) {
    %c0_i32 = arith.constant 0 : i32
    %c0_i32_0 = arith.constant 0 : i32
    %c0_i32_1 = arith.constant 0 : i32
    return %c0_i32, %c0_i32_0 : i32, i32
  }
  func.func @transform_13(%arg0: i32) -> (i32, i32) {
    %c0_i32 = arith.constant 0 : i32
    %c0_i32_0 = arith.constant 0 : i32
    %c0_i32_1 = arith.constant 0 : i32
    return %c0_i32, %c0_i32_0 : i32, i32
  }
  func.func @transform_14(%arg0: i32) -> (i32, i32) {
    %c0_i32 = arith.constant 0 : i32
    %c0_i32_0 = arith.constant 0 : i32
    %c0_i32_1 = arith.constant 0 : i32
    return %c0_i32, %c0_i32_0 : i32, i32
  }
}

</mosaic_0001>

<llo_original>
// kernel: tpu_custom_call.1
$region0: #{tpu_custom_call.1}
  #allocation0 [shape = 'u32[]', space=smem, size = 0x4, offset = 0x4, fixed_abs, tag = 'smem constant byte address 0x4 - core index']
  #allocation1 [shape = 'u32[144,128]{1,0:T(1,128)}', space=vmem, size = 0x12000, scoped, tag = 'internal scratch']
  #allocation2 [shape = 'f32[16,128]{1,0:T(8,128)}', space=vmem, size = 0x2000, scoped, tag = 'scratch operand']
  %s0 = inlined_call_operand.vmem [shape: f32[5,16,1], index: 0, kind: input, shape index: {}]
  %s1 = inlined_call_operand.vmem [shape: f32[5,24,1], index: 1, kind: input, shape index: {}]
  %s2 = inlined_call_operand.vmem [shape: f32[16,16], index: 2, kind: input, shape index: {}]
  %s3 = inlined_call_operand.vmem [shape: f32[24,16], index: 3, kind: input, shape index: {}]
  %s4 = inlined_call_operand.vmem [shape: f32[24,16], index: 4, kind: input, shape index: {}]
  %s5 = inlined_call_operand.vmem [shape: f32[16,24], index: 5, kind: input, shape index: {}]
  %s6 = inlined_call_operand.vmem [shape: f32[16,384], index: 6, kind: input, shape index: {}]
  %s7 = inlined_call_operand.hbm [shape: f32[128,384], index: 7, kind: input, shape index: {}]
  %s8 = inlined_call_operand.vmem [shape: f32[1,384], index: 8, kind: input, shape index: {}]
  %s9 = inlined_call_operand.vmem [shape: f32[1,384], index: 9, kind: input, shape index: {}]
  %s10 = inlined_call_operand.vmem [shape: f32[16,128], index: 10, kind: input, shape index: {}]
  %s11 = inlined_call_operand.vmem [shape: f32[128,128], index: 11, kind: input, shape index: {}]
  %s12 = inlined_call_operand.vmem [shape: f32[1,128], index: 12, kind: input, shape index: {}]
  %s13 = inlined_call_operand.hbm [shape: f32[16,128], index: 13, kind: output, shape index: {0}]
  %s14 = inlined_call_operand.hbm [shape: f32[16,128], index: 14, kind: output, shape index: {1}]
  %15 = xla_tuple %s13, %s14
  %s16 = sld [smem:[#allocation0]]
  $region101: #{tpu_custom_call.1} parent=0
    _
  %s18 = ssub.s32 1, %s16
  %s19 = scalar_select 0, %s18, %s16
  $region1: #{tpu_custom_call.1} parent=0
    #allocation3 [shape = 'u8[196608]{0}', space=vmem, size = 0x30000, scoped, tag = 'input window, operand 7, single buffered']
    #allocation4 [shape = 's32[2]{0}', space=sflag, size = 0x8, scoped, tag = 'scoped memory for tpu_custom_call.1']
    #allocation5 [shape = 's32[2]{0}', space=sflag, size = 0x8, scoped, tag = 'scoped memory for tpu_custom_call.1']
    #allocation6 [shape = 'u8[8192]{0}', space=vmem, size = 0x2000, scoped, tag = 'output window, operand 0, single buffered']
    #allocation7 [shape = 'u8[8192]{0}', space=vmem, size = 0x2000, scoped, tag = 'output window, operand 1, single buffered']
    #allocation8 [shape = 's32[1]{0}', space=sflag, size = 0x4, scoped, tag = 'scoped memory for tpu_custom_call.1']
    %20 = vsyncpa [#allocation4], 0
    %21 = vsyncpa [#allocation5], 0
    %22 = vsyncpa [#allocation8], 0
    loop: start=0, step=1, limit=7
    $region2: #{tpu_custom_call.1} parent=1 // loop_pre_header
      _
    $region3: #{tpu_custom_call.1} parent=1 // loop_header
      %s24 = sphi 0, %s28
      %p25 = scmp.ge.s32.totalorder %s24, 7
      %s34 = sphi 0, %s36
      %s37 = sphi 0, %s34
      %s38 = sphi 0, %s37
      %s54 = sphi 0, %s38
      %s60 = sphi 0, %s62
      %s63 = sphi 0, %s60
      %s64 = sphi 0, %s63
      %s80 = sphi 0, %s64
      %s84 = sphi 0, %s84
      %s86 = sphi 0, %s84
      %s87 = sphi 0, %s86
      %s101 = sphi 0, %s87
      %s105 = sphi 0, %s105
      %s107 = sphi 0, %s105
      %s108 = sphi 0, %s107
      %s122 = sphi 0, %s108
      %s126 = sphi 0, %s126
      %s128 = sphi 0, %s126
      %s129 = sphi 0, %s128
      %s143 = sphi 0, %s129
      %s147 = sphi 0, %s147
      %s149 = sphi 0, %s147
      %s150 = sphi 0, %s149
      %s164 = sphi 0, %s150
      %s168 = sphi 0, %s168
      %s170 = sphi 0, %s168
      %s171 = sphi 0, %s170
      %s185 = sphi 0, %s171
      %s189 = sphi 0, %s189
      %s191 = sphi 0, %s189
      %s192 = sphi 0, %s191
      %s206 = sphi 0, %s192
      %s210 = sphi 0, %s210
      %s212 = sphi 0, %s210
      %s213 = sphi 0, %s212
      %s227 = sphi 0, %s213
      %s231 = sphi 0, %s231
      %s233 = sphi 0, %s231
      %s234 = sphi 0, %s233
      %s248 = sphi 0, %s234
      %s252 = sphi 0, %s252
      %s254 = sphi 0, %s252
      %s255 = sphi 0, %s254
      %s269 = sphi 0, %s255
      %s273 = sphi 0, %s273
      %s275 = sphi 0, %s273
      %s276 = sphi 0, %s275
      %s290 = sphi 0, %s276
      %s294 = sphi 0, %s294
      %s296 = sphi 0, %s294
      %s297 = sphi 0, %s296
      %s311 = sphi 0, %s297
      %s315 = sphi 0, %s315
      %s317 = sphi 0, %s315
      %s318 = sphi 0, %s317
      %s332 = sphi 0, %s318
      %s336 = sphi 0, %s336
      %s338 = sphi 0, %s336
      %s339 = sphi 0, %s338
      %s353 = sphi 0, %s339
    $region4: #{tpu_custom_call.1} parent=1 // loop_header_branch
      %27 = sbr.rel (%p25) target = $region8
    $region5: #{tpu_custom_call.1} parent=1 // loop_body
      %s29 = ssub.s32 %s24, 1
      %s30 = ssub.s32 %s24, 2
      %s31 = sadd.s32 %s24, 1
      %s32 = ssub.s32 %s24, %s31
      %p33 = scmp.eq.s32.totalorder %s32, 0
      %s35 = sadd.s32 %s34, 1
      %s36 = scalar_select %p33, %s34, %s35
      %p39 = pneg %p33
      %p40 = scmp.eq.s32.totalorder %s24, 4
      %p41 = por %p39, %p40
      %p42 = scmp.ne.s32.totalorder %s34, %s37
      %p43 = scmp.eq.s32.totalorder %s24, 0
      %p44 = por %p42, %p43
      %p45 = scmp.ne.s32.totalorder %s34, %s37
      %p46 = scmp.eq.s32.totalorder %s29, 4
      %p47 = por %p45, %p46
      %p48 = scmp.ne.s32.totalorder %s37, %s38
      %p49 = scmp.eq.s32.totalorder %s29, 0
      %p50 = por %p48, %p49
      %p51 = scmp.ne.s32.totalorder %s37, %s38
      %p52 = scmp.eq.s32.totalorder %s30, 4
      %p53 = por %p51, %p52
      %p55 = scmp.ne.s32.totalorder %s38, %s54
      %p56 = scmp.eq.s32.totalorder %s30, 0
      %p57 = por %p55, %p56
      %s58 = ssub.s32 %s24, %s31
      %p59 = scmp.eq.s32.totalorder %s58, 0
      %s61 = sadd.s32 %s60, 1
      %s62 = scalar_select %p59, %s60, %s61
      %p65 = pneg %p59
      %p66 = scmp.eq.s32.totalorder %s24, 4
      %p67 = por %p65, %p66
      %p68 = scmp.ne.s32.totalorder %s60, %s63
      %p69 = scmp.eq.s32.totalorder %s24, 0
      %p70 = por %p68, %p69
      %p71 = scmp.ne.s32.totalorder %s60, %s63
      %p72 = scmp.eq.s32.totalorder %s29, 4
      %p73 = por %p71, %p72
      %p74 = scmp.ne.s32.totalorder %s63, %s64
      %p75 = scmp.eq.s32.totalorder %s29, 0
      %p76 = por %p74, %p75
      %p77 = scmp.ne.s32.totalorder %s63, %s64
      %p78 = scmp.eq.s32.totalorder %s30, 4
      %p79 = por %p77, %p78
      %p81 = scmp.ne.s32.totalorder %s64, %s80
      %p82 = scmp.eq.s32.totalorder %s30, 0
      %p83 = por %p81, %p82
      %s85 = sadd.s32 %s84, 1
      %p88 = scmp.eq.s32.totalorder %s24, 4
      %p89 = scmp.ne.s32.totalorder %s84, %s86
      %p90 = scmp.eq.s32.totalorder %s24, 0
      %p91 = por %p89, %p90
      %p92 = scmp.ne.s32.totalorder %s84, %s86
      %p93 = scmp.eq.s32.totalorder %s29, 4
      %p94 = por %p92, %p93
      %p95 = scmp.ne.s32.totalorder %s86, %s87
      %p96 = scmp.eq.s32.totalorder %s29, 0
      %p97 = por %p95, %p96
      %p98 = scmp.ne.s32.totalorder %s86, %s87
      %p99 = scmp.eq.s32.totalorder %s30, 4
      %p100 = por %p98, %p99
      %p102 = scmp.ne.s32.totalorder %s87, %s101
      %p103 = scmp.eq.s32.totalorder %s30, 0
      %p104 = por %p102, %p103
      %s106 = sadd.s32 %s105, 1
      %p109 = scmp.eq.s32.totalorder %s24, 4
      %p110 = scmp.ne.s32.totalorder %s105, %s107
      %p111 = scmp.eq.s32.totalorder %s24, 0
      %p112 = por %p110, %p111
      %p113 = scmp.ne.s32.totalorder %s105, %s107
      %p114 = scmp.eq.s32.totalorder %s29, 4
      %p115 = por %p113, %p114
      %p116 = scmp.ne.s32.totalorder %s107, %s108
      %p117 = scmp.eq.s32.totalorder %s29, 0
      %p118 = por %p116, %p117
      %p119 = scmp.ne.s32.totalorder %s107, %s108
      %p120 = scmp.eq.s32.totalorder %s30, 4
      %p121 = por %p119, %p120
      %p123 = scmp.ne.s32.totalorder %s108, %s122
      %p124 = scmp.eq.s32.totalorder %s30, 0
      %p125 = por %p123, %p124
      %s127 = sadd.s32 %s126, 1
      %p130 = scmp.eq.s32.totalorder %s24, 4
      %p131 = scmp.ne.s32.totalorder %s126, %s128
      %p132 = scmp.eq.s32.totalorder %s24, 0
      %p133 = por %p131, %p132
      %p134 = scmp.ne.s32.totalorder %s126, %s128
      %p135 = scmp.eq.s32.totalorder %s29, 4
      %p136 = por %p134, %p135
      %p137 = scmp.ne.s32.totalorder %s128, %s129
      %p138 = scmp.eq.s32.totalorder %s29, 0
      %p139 = por %p137, %p138
      %p140 = scmp.ne.s32.totalorder %s128, %s129
      %p141 = scmp.eq.s32.totalorder %s30, 4
      %p142 = por %p140, %p141
      %p144 = scmp.ne.s32.totalorder %s129, %s143
      %p145 = scmp.eq.s32.totalorder %s30, 0
      %p146 = por %p144, %p145
      %s148 = sadd.s32 %s147, 1
      %p151 = scmp.eq.s32.totalorder %s24, 4
      %p152 = scmp.ne.s32.totalorder %s147, %s149
      %p153 = scmp.eq.s32.totalorder %s24, 0
      %p154 = por %p152, %p153
      %p155 = scmp.ne.s32.totalorder %s147, %s149
      %p156 = scmp.eq.s32.totalorder %s29, 4
      %p157 = por %p155, %p156
      %p158 = scmp.ne.s32.totalorder %s149, %s150
      %p159 = scmp.eq.s32.totalorder %s29, 0
      %p160 = por %p158, %p159
      %p161 = scmp.ne.s32.totalorder %s149, %s150
      %p162 = scmp.eq.s32.totalorder %s30, 4
      %p163 = por %p161, %p162
      %p165 = scmp.ne.s32.totalorder %s150, %s164
      %p166 = scmp.eq.s32.totalorder %s30, 0
      %p167 = por %p165, %p166
      %s169 = sadd.s32 %s168, 1
      %p172 = scmp.eq.s32.totalorder %s24, 4
      %p173 = scmp.ne.s32.totalorder %s168, %s170
      %p174 = scmp.eq.s32.totalorder %s24, 0
      %p175 = por %p173, %p174
      %p176 = scmp.ne.s32.totalorder %s168, %s170
      %p177 = scmp.eq.s32.totalorder %s29, 4
      %p178 = por %p176, %p177
      %p179 = scmp.ne.s32.totalorder %s170, %s171
      %p180 = scmp.eq.s32.totalorder %s29, 0
      %p181 = por %p179, %p180
      %p182 = scmp.ne.s32.totalorder %s170, %s171
      %p183 = scmp.eq.s32.totalorder %s30, 4
      %p184 = por %p182, %p183
      %p186 = scmp.ne.s32.totalorder %s171, %s185
      %p187 = scmp.eq.s32.totalorder %s30, 0
      %p188 = por %p186, %p187
      %s190 = sadd.s32 %s189, 1
      %p193 = scmp.eq.s32.totalorder %s24, 4
      %p194 = scmp.ne.s32.totalorder %s189, %s191
      %p195 = scmp.eq.s32.totalorder %s24, 0
      %p196 = por %p194, %p195
      %p197 = scmp.ne.s32.totalorder %s189, %s191
      %p198 = scmp.eq.s32.totalorder %s29, 4
      %p199 = por %p197, %p198
      %p200 = scmp.ne.s32.totalorder %s191, %s192
      %p201 = scmp.eq.s32.totalorder %s29, 0
      %p202 = por %p200, %p201
      %p203 = scmp.ne.s32.totalorder %s191, %s192
      %p204 = scmp.eq.s32.totalorder %s30, 4
      %p205 = por %p203, %p204
      %p207 = scmp.ne.s32.totalorder %s192, %s206
      %p208 = scmp.eq.s32.totalorder %s30, 0
      %p209 = por %p207, %p208
      %s211 = sadd.s32 %s210, 1
      %p214 = scmp.eq.s32.totalorder %s24, 4
      %p215 = scmp.ne.s32.totalorder %s210, %s212
      %p216 = scmp.eq.s32.totalorder %s24, 0
      %p217 = por %p215, %p216
      %p218 = scmp.ne.s32.totalorder %s210, %s212
      %p219 = scmp.eq.s32.totalorder %s29, 4
      %p220 = por %p218, %p219
      %p221 = scmp.ne.s32.totalorder %s212, %s213
      %p222 = scmp.eq.s32.totalorder %s29, 0
      %p223 = por %p221, %p222
      %p224 = scmp.ne.s32.totalorder %s212, %s213
      %p225 = scmp.eq.s32.totalorder %s30, 4
      %p226 = por %p224, %p225
      %p228 = scmp.ne.s32.totalorder %s213, %s227
      %p229 = scmp.eq.s32.totalorder %s30, 0
      %p230 = por %p228, %p229
      %s232 = sadd.s32 %s231, 1
      %p235 = scmp.eq.s32.totalorder %s24, 4
      %p236 = scmp.ne.s32.totalorder %s231, %s233
      %p237 = scmp.eq.s32.totalorder %s24, 0
      %p238 = por %p236, %p237
      %p239 = scmp.ne.s32.totalorder %s231, %s233
      %p240 = scmp.eq.s32.totalorder %s29, 4
      %p241 = por %p239, %p240
      %p242 = scmp.ne.s32.totalorder %s233, %s234
      %p243 = scmp.eq.s32.totalorder %s29, 0
      %p244 = por %p242, %p243
      %p245 = scmp.ne.s32.totalorder %s233, %s234
      %p246 = scmp.eq.s32.totalorder %s30, 4
      %p247 = por %p245, %p246
      %p249 = scmp.ne.s32.totalorder %s234, %s248
      %p250 = scmp.eq.s32.totalorder %s30, 0
      %p251 = por %p249, %p250
      %s253 = sadd.s32 %s252, 1
      %p256 = scmp.eq.s32.totalorder %s24, 4
      %p257 = scmp.ne.s32.totalorder %s252, %s254
      %p258 = scmp.eq.s32.totalorder %s24, 0
      %p259 = por %p257, %p258
      %p260 = scmp.ne.s32.totalorder %s252, %s254
      %p261 = scmp.eq.s32.totalorder %s29, 4
      %p262 = por %p260, %p261
      %p263 = scmp.ne.s32.totalorder %s254, %s255
      %p264 = scmp.eq.s32.totalorder %s29, 0
      %p265 = por %p263, %p264
      %p266 = scmp.ne.s32.totalorder %s254, %s255
      %p267 = scmp.eq.s32.totalorder %s30, 4
      %p268 = por %p266, %p267
      %p270 = scmp.ne.s32.totalorder %s255, %s269
      %p271 = scmp.eq.s32.totalorder %s30, 0
      %p272 = por %p270, %p271
      %s274 = sadd.s32 %s273, 1
      %p277 = scmp.eq.s32.totalorder %s24, 4
      %p278 = scmp.ne.s32.totalorder %s273, %s275
      %p279 = scmp.eq.s32.totalorder %s24, 0
      %p280 = por %p278, %p279
      %p281 = scmp.ne.s32.totalorder %s273, %s275
      %p282 = scmp.eq.s32.totalorder %s29, 4
      %p283 = por %p281, %p282
      %p284 = scmp.ne.s32.totalorder %s275, %s276
      %p285 = scmp.eq.s32.totalorder %s29, 0
      %p286 = por %p284, %p285
      %p287 = scmp.ne.s32.totalorder %s275, %s276
      %p288 = scmp.eq.s32.totalorder %s30, 4
      %p289 = por %p287, %p288
      %p291 = scmp.ne.s32.totalorder %s276, %s290
      %p292 = scmp.eq.s32.totalorder %s30, 0
      %p293 = por %p291, %p292
      %s295 = sadd.s32 %s294, 1
      %p298 = scmp.eq.s32.totalorder %s24, 4
      %p299 = scmp.ne.s32.totalorder %s294, %s296
      %p300 = scmp.eq.s32.totalorder %s24, 0
      %p301 = por %p299, %p300
      %p302 = scmp.ne.s32.totalorder %s294, %s296
      %p303 = scmp.eq.s32.totalorder %s29, 4
      %p304 = por %p302, %p303
      %p305 = scmp.ne.s32.totalorder %s296, %s297
      %p306 = scmp.eq.s32.totalorder %s29, 0
      %p307 = por %p305, %p306
      %p308 = scmp.ne.s32.totalorder %s296, %s297
      %p309 = scmp.eq.s32.totalorder %s30, 4
      %p310 = por %p308, %p309
      %p312 = scmp.ne.s32.totalorder %s297, %s311
      %p313 = scmp.eq.s32.totalorder %s30, 0
      %p314 = por %p312, %p313
      %s316 = sadd.s32 %s315, 1
      %p319 = scmp.eq.s32.totalorder %s24, 4
      %p320 = scmp.ne.s32.totalorder %s315, %s317
      %p321 = scmp.eq.s32.totalorder %s24, 0
      %p322 = por %p320, %p321
      %p323 = scmp.ne.s32.totalorder %s315, %s317
      %p324 = scmp.eq.s32.totalorder %s29, 4
      %p325 = por %p323, %p324
      %p326 = scmp.ne.s32.totalorder %s317, %s318
      %p327 = scmp.eq.s32.totalorder %s29, 0
      %p328 = por %p326, %p327
      %p329 = scmp.ne.s32.totalorder %s317, %s318
      %p330 = scmp.eq.s32.totalorder %s30, 4
      %p331 = por %p329, %p330
      %p333 = scmp.ne.s32.totalorder %s318, %s332
      %p334 = scmp.eq.s32.totalorder %s30, 0
      %p335 = por %p333, %p334
      %s337 = sadd.s32 %s336, 1
      %p340 = scmp.eq.s32.totalorder %s24, 4
      %p341 = scmp.ne.s32.totalorder %s336, %s338
      %p342 = scmp.eq.s32.totalorder %s24, 0
      %p343 = por %p341, %p342
      %p344 = scmp.ne.s32.totalorder %s336, %s338
      %p345 = scmp.eq.s32.totalorder %s29, 4
      %p346 = por %p344, %p345
      %p347 = scmp.ne.s32.totalorder %s338, %s339
      %p348 = scmp.eq.s32.totalorder %s29, 0
      %p349 = por %p347, %p348
      %p350 = scmp.ne.s32.totalorder %s338, %s339
      %p351 = scmp.eq.s32.totalorder %s30, 4
      %p352 = por %p350, %p351
      %p354 = scmp.ne.s32.totalorder %s339, %s353
      %p355 = scmp.eq.s32.totalorder %s30, 0
      %p356 = por %p354, %p355
      %p357 = scmp.le.s32.totalorder 1, %s24
      %p358 = scmp.lt.s32.totalorder %s24, 6
      %p359 = pnand %p357, %p358
      %p360 = pneg %p359
      // Predicated region
      $region9: #{tpu_custom_call.1} parent=5 // pred_check
        _
      $region10: #{tpu_custom_call.1} parent=5 // pred_check_branch
        %362 = sbr.rel (%p359) target = $region12
      $region11: #{tpu_custom_call.1} parent=5 // pred_region
        %s363 = ssub.s32 %s24, 1
        // Predicated region
        $region13: #{tpu_custom_call.1} parent=11 // pred_check
          %p364 = pneg %p97
        $region14: #{tpu_custom_call.1} parent=11 // pred_check_branch
          %366 = sbr.rel (%p364) target = $region16
        $region15: #{tpu_custom_call.1} parent=11 // pred_region
          _
        $region16: #{tpu_custom_call.1} parent=11 // pred_fallthru
          _
        // Predicated region
        $region17: #{tpu_custom_call.1} parent=11 // pred_check
          %p367 = pneg %p118
        $region18: #{tpu_custom_call.1} parent=11 // pred_check_branch
          %369 = sbr.rel (%p367) target = $region20
        $region19: #{tpu_custom_call.1} parent=11 // pred_region
          _
        $region20: #{tpu_custom_call.1} parent=11 // pred_fallthru
          _
        // Predicated region
        $region21: #{tpu_custom_call.1} parent=11 // pred_check
          %p370 = pneg %p139
        $region22: #{tpu_custom_call.1} parent=11 // pred_check_branch
          %372 = sbr.rel (%p370) target = $region24
        $region23: #{tpu_custom_call.1} parent=11 // pred_region
          _
        $region24: #{tpu_custom_call.1} parent=11 // pred_fallthru
          _
        // Predicated region
        $region25: #{tpu_custom_call.1} parent=11 // pred_check
          %p373 = pneg %p160
        $region26: #{tpu_custom_call.1} parent=11 // pred_check_branch
          %375 = sbr.rel (%p373) target = $region28
        $region27: #{tpu_custom_call.1} parent=11 // pred_region
          _
        $region28: #{tpu_custom_call.1} parent=11 // pred_fallthru
          _
        // Predicated region
        $region29: #{tpu_custom_call.1} parent=11 // pred_check
          %p376 = pneg %p181
        $region30: #{tpu_custom_call.1} parent=11 // pred_check_branch
          %378 = sbr.rel (%p376) target = $region32
        $region31: #{tpu_custom_call.1} parent=11 // pred_region
          _
        $region32: #{tpu_custom_call.1} parent=11 // pred_fallthru
          _
        // Predicated region
        $region33: #{tpu_custom_call.1} parent=11 // pred_check
          %p379 = pneg %p202
        $region34: #{tpu_custom_call.1} parent=11 // pred_check_branch
          %381 = sbr.rel (%p379) target = $region36
        $region35: #{tpu_custom_call.1} parent=11 // pred_region
          %s383 = ssub.s32 6144, 6144
          %384 = vsyncadd [#allocation4], %s383
          %s385 = sshll.u32 [#allocation3], 4
          %s386 = int_to_ptr.vmem [resolvable:$true] %s385
          %391 = dma.hbm_to_vmem [thread:$0]  %s7, 6144, %s386, [#allocation4], 384, 384, 24
        $region36: #{tpu_custom_call.1} parent=11 // pred_fallthru
          _
        // Predicated region
        $region37: #{tpu_custom_call.1} parent=11 // pred_check
          %p392 = pneg %p223
        $region38: #{tpu_custom_call.1} parent=11 // pred_check_branch
          %394 = sbr.rel (%p392) target = $region40
        $region39: #{tpu_custom_call.1} parent=11 // pred_region
          _
        $region40: #{tpu_custom_call.1} parent=11 // pred_fallthru
          _
        // Predicated region
        $region41: #{tpu_custom_call.1} parent=11 // pred_check
          %p395 = pneg %p244
        $region42: #{tpu_custom_call.1} parent=11 // pred_check_branch
          %397 = sbr.rel (%p395) target = $region44
        $region43: #{tpu_custom_call.1} parent=11 // pred_region
          _
        $region44: #{tpu_custom_call.1} parent=11 // pred_fallthru
          _
        // Predicated region
        $region45: #{tpu_custom_call.1} parent=11 // pred_check
          %p398 = pneg %p265
        $region46: #{tpu_custom_call.1} parent=11 // pred_check_branch
          %400 = sbr.rel (%p398) target = $region48
        $region47: #{tpu_custom_call.1} parent=11 // pred_region
          _
        $region48: #{tpu_custom_call.1} parent=11 // pred_fallthru
          _
        // Predicated region
        $region49: #{tpu_custom_call.1} parent=11 // pred_check
          %p401 = pneg %p286
        $region50: #{tpu_custom_call.1} parent=11 // pred_check_branch
          %403 = sbr.rel (%p401) target = $region52
        $region51: #{tpu_custom_call.1} parent=11 // pred_region
          _
        $region52: #{tpu_custom_call.1} parent=11 // pred_fallthru
          _
        // Predicated region
        $region53: #{tpu_custom_call.1} parent=11 // pred_check
          %p404 = pneg %p307
        $region54: #{tpu_custom_call.1} parent=11 // pred_check_branch
          %406 = sbr.rel (%p404) target = $region56
        $region55: #{tpu_custom_call.1} parent=11 // pred_region
          _
        $region56: #{tpu_custom_call.1} parent=11 // pred_fallthru
          _
      $region12: #{tpu_custom_call.1} parent=5 // pred_fallthru
        _
      %p407 = scmp.lt.s32.totalorder %s24, 5
      // Predicated region
      $region57: #{tpu_custom_call.1} parent=5 // pred_check
        %p408 = pneg %p407
      $region58: #{tpu_custom_call.1} parent=5 // pred_check_branch
        %410 = sbr.rel (%p408) target = $region60
      $region59: #{tpu_custom_call.1} parent=5 // pred_region
        // Predicated region
        $region61: #{tpu_custom_call.1} parent=59 // pred_check
          %p411 = pneg %p44
        $region62: #{tpu_custom_call.1} parent=59 // pred_check_branch
          %413 = sbr.rel (%p411) target = $region64
        $region63: #{tpu_custom_call.1} parent=59 // pred_region
          %p414 = scmp.lt.s32.totalorder %s24, 4
          %s415 = scalar_select %p414, %s24, 4
          %s416 = smul.addr %s415, 2
          %s417 = smul.addr %s416, 8
          %s418 = scalar_lea.vmem %s0, %s417
        $region64: #{tpu_custom_call.1} parent=59 // pred_fallthru
          _
        // Predicated region
        $region65: #{tpu_custom_call.1} parent=59 // pred_check
          %p419 = pneg %p70
        $region66: #{tpu_custom_call.1} parent=59 // pred_check_branch
          %421 = sbr.rel (%p419) target = $region68
        $region67: #{tpu_custom_call.1} parent=59 // pred_region
          %p422 = scmp.lt.s32.totalorder %s24, 4
          %s423 = scalar_select %p422, %s24, 4
          %s424 = smul.addr %s423, 3
          %s425 = smul.addr %s424, 8
          %s426 = scalar_lea.vmem %s1, %s425
        $region68: #{tpu_custom_call.1} parent=59 // pred_fallthru
          _
      $region60: #{tpu_custom_call.1} parent=5 // pred_fallthru
        _
      %p427 = scmp.le.s32.totalorder 1, %s24
      %p428 = scmp.lt.s32.totalorder %s24, 6
      %p429 = pnand %p427, %p428
      %p430 = pneg %p429
      // Predicated region
      $region69: #{tpu_custom_call.1} parent=5 // pred_check
        _
      $region70: #{tpu_custom_call.1} parent=5 // pred_check_branch
        %432 = sbr.rel (%p429) target = $region72
      $region71: #{tpu_custom_call.1} parent=5 // pred_region
        %s433 = ssub.s32 %s24, 1
        // Predicated region
        $region73: #{tpu_custom_call.1} parent=71 // pred_check
          %p434 = pneg %p202
        $region74: #{tpu_custom_call.1} parent=71 // pred_check_branch
          %436 = sbr.rel (%p434) target = $region76
        $region75: #{tpu_custom_call.1} parent=71 // pred_region
          %437 = dma.done [#allocation4], 6144
        $region76: #{tpu_custom_call.1} parent=71 // pred_fallthru
          _
        %p438 = scmp.lt.s32.totalorder %s29, 4
        %s439 = scalar_select %p438, %s29, 4
        %s440 = smul.addr %s439, 2
        %s441 = smul.addr %s440, 8
        %s442 = scalar_lea.vmem %s0, %s441
        %p443 = pneg %p50
        %p444 = pneg %p47
        %p445 = scmp.lt.s32.totalorder %s29, 4
        %s446 = scalar_select %p445, %s29, 4
        %s447 = smul.addr %s446, 3
        %s448 = smul.addr %s447, 8
        %s449 = scalar_lea.vmem %s1, %s448
        %p450 = pneg %p76
        %p451 = pneg %p73
        %p452 = pneg %p97
        %p453 = pneg %p94
        %p454 = pneg %p118
        %p455 = pneg %p115
        %p456 = pneg %p139
        %p457 = pneg %p136
        %p458 = pneg %p160
        %p459 = pneg %p157
        %p460 = pneg %p181
        %p461 = pneg %p178
        %p462 = pneg %p202
        %p463 = pneg %p199
        %p464 = pneg %p223
        %p465 = pneg %p220
        %p466 = pneg %p244
        %p467 = pneg %p241
        %p468 = pneg %p265
        %p469 = pneg %p262
        %p470 = pneg %p286
        %p471 = pneg %p283
        %p472 = pneg %p307
        %p473 = pneg %p304
        %p474 = pneg %p328
        %p475 = pneg %p325
        %p476 = pneg %p349
        %p477 = pneg %p346
        %p478 = scmp.lt.s32.totalorder %s29, 4
        %s479 = scalar_select %p478, %s29, 4
        %s480 = smul.addr %s479, 2
        %s481 = smul.addr %s480, 8
        %s482 = scalar_lea.vmem %s0, %s481
        %p483 = scmp.lt.s32.totalorder %s29, 4
        %s484 = scalar_select %p483, %s29, 4
        %s485 = smul.addr %s484, 3
        %s486 = smul.addr %s485, 8
        %s487 = scalar_lea.vmem %s1, %s486
        %p488 = scmp.eq.s32.totalorder %s29, 0
        // Predicated region
        $region77: #{tpu_custom_call.1} parent=71 // pred_check
          %p489 = pneg %p488
        $region78: #{tpu_custom_call.1} parent=71 // pred_check_branch
          %491 = sbr.rel (%p489) target = $region80
        $region79: #{tpu_custom_call.1} parent=71 // pred_region
          %492 = vst [vmem:[#allocation6] sm:$0xff] 0.0
          %493 = vst [vmem:[#allocation6 + $0x8] sm:$0xff] 0.0
          %494 = vst [vmem:[#allocation7] sm:$0xff] 0.0
          %495 = vst [vmem:[#allocation7 + $0x8] sm:$0xff] 0.0
          %496 = vst [vmem:[#allocation2] sm:$0xff] 0.0
          %497 = vst [vmem:[#allocation2 + $0x8] sm:$0xff] 0.0
        $region80: #{tpu_custom_call.1} parent=71 // pred_fallthru
          _
        %v498 = vld [vmem:[%s482] sm:$0xff]
        %v499 = vld [vmem:[%s482 + $0x8] sm:$0xff]
        %v500 = vld [vmem:[%s487] sm:$0xff]
        %v501 = vld [vmem:[%s487 + $0x8] sm:$0xff]
        %v502 = vld [vmem:[%s487 + $0x10] sm:$0xff]
        %v503 = vld [vmem:[#allocation6] sm:$0xff]
        %v504 = vld [vmem:[#allocation6 + $0x8] sm:$0xff]
        %v505 = vld [vmem:[#allocation7] sm:$0xff]
        %v506 = vld [vmem:[#allocation7 + $0x8] sm:$0xff]
        %v507 = vld [vmem:[%s4] sm:$0xff]
        %v508 = vld [vmem:[%s4 + $0x8] sm:$0xff]
        %v509 = vld [vmem:[%s4 + $0x10] sm:$0xff]
        %v510 = vld [vmem:[%s5] sm:$0xff]
        %v511 = vld [vmem:[%s5 + $0x8] sm:$0xff]
        %vm512 = vcmask 130048
        %v514 = vsel %vm512, %v507, 0
        %v517 = vsel %vm512, %v508, 0
        %v520 = vsel %vm512, %v509, 0
        %522 = vmatprep.subr.mxu0 0.0
        %523 = vmatpush1.msra.mxu0 0.0
        %524 = vmatprep.subr.mxu0 0.0
        %525 = vmatpush1.msra.mxu0 0.0
        %526 = vmatprep.subr.mxu0 0.0
        %527 = vmatpush1.msra.mxu0 0.0
        %528 = vmatprep.subr.mxu0 0.0
        %529 = vmatpush1.msra.mxu0 0.0
        %530 = vmatprep.subr.mxu0 0.0
        %531 = vmatpush1.msra.mxu0 0.0
        %532 = vmatprep.subr.mxu0 0.0
        %533 = vmatpush1.msra.mxu0 0.0
        %534 = vmatprep.subr.mxu0 0.0
        %535 = vmatpush1.msra.mxu0 0.0
        %536 = vmatprep.subr.mxu0 0.0
        %537 = vmatpush1.msra.mxu0 0.0
        %538 = vmatprep.subr.mxu0 0.0
        %539 = vmatpush1.msra.mxu0 0.0
        %540 = vmatprep.subr.mxu0 0.0
        %541 = vmatpush1.msra.mxu0 0.0
        %542 = vmatprep.subr.mxu0 0.0
        %543 = vmatpush1.msra.mxu0 0.0
        %544 = vmatprep.subr.mxu0 0.0
        %545 = vmatpush1.msra.mxu0 0.0
        %546 = vmatprep.subr.mxu0 0.0
        %547 = vmatpush1.msra.mxu0 0.0
        %548 = vmatprep.subr.mxu0 0.0
        %549 = vmatpush1.msra.mxu0 0.0
        %550 = vmatprep.subr.mxu0 0.0
        %551 = vmatpush1.msra.mxu0 %v504
        %552 = vmatprep.subr.mxu0 0.0
        %553 = vmatpush1.msra.mxu0 %v503
        %554 = vmatprep.subr.mxu0 0.0
        %555 = vmatpush2.msra.mxu0 0.0
        %556 = vmatprep.subr.mxu0 0.0
        %557 = vmatpush2.msra.mxu0 0.0
        %558 = vmatprep.subr.mxu0 0.0
        %559 = vmatpush2.msra.mxu0 0.0
        %560 = vmatprep.subr.mxu0 0.0
        %561 = vmatpush2.msra.mxu0 0.0
        %562 = vmatprep.subr.mxu0 0.0
        %563 = vmatpush2.msra.mxu0 0.0
        %564 = vmatprep.subr.mxu0 0.0
        %565 = vmatpush2.msra.mxu0 0.0
        %566 = vmatprep.subr.mxu0 0.0
        %567 = vmatpush2.msra.mxu0 0.0
        %568 = vmatprep.subr.mxu0 0.0
        %569 = vmatpush2.msra.mxu0 0.0
        %570 = vmatprep.subr.mxu0 0.0
        %571 = vmatpush2.msra.mxu0 0.0
        %572 = vmatprep.subr.mxu0 0.0
        %573 = vmatpush2.msra.mxu0 0.0
        %574 = vmatprep.subr.mxu0 0.0
        %575 = vmatpush2.msra.mxu0 0.0
        %576 = vmatprep.subr.mxu0 0.0
        %577 = vmatpush2.msra.mxu0 0.0
        %578 = vmatprep.subr.mxu0 0.0
        %579 = vmatpush2.msra.mxu0 0.0
        %580 = vmatprep.subr.mxu0 0.0
        %581 = vmatpush2.msra.mxu0 0.0
        %582 = vmatprep.subr.mxu0 0.0
        %583 = vmatpush2.msra.mxu0 0.0
        %584 = vmatprep.subr.mxu0 0.0
        %585 = vmatpush2.msra.mxu0 0.0
        %586 = vmatprep.mubr.f32.mxu0 0.0
        %587 = vmatmul.mubr.f32.gmra.mxu0 %v514
        %v588 = vpop.f32.mrf.mxu0
        %v589 = vadd.f32 0.0, %v588
        %v590 = vpop.f32.mrf.mxu0
        %591 = vmatprep.mubr.f32.mxu0 0.0
        %592 = vmatmul.mubr.f32.gmra.mxu0 %v517
        %v593 = vpop.f32.mrf.mxu0
        %v594 = vadd.f32 0.0, %v593
        %v595 = vpop.f32.mrf.mxu0
        %596 = vmatprep.mubr.f32.mxu0 0.0
        %597 = vmatmul.mubr.f32.gmra.mxu0 %v520
        %v598 = vpop.f32.mrf.mxu0
        %v599 = vadd.f32 0.0, %v598
        %v600 = vpop.f32.mrf.mxu0
        %601 = vdwg.mxu0
        %602 = vmatprep.subr.mxu0 0.0
        %603 = vmatpush1.msra.mxu0 0.0
        %604 = vmatprep.subr.mxu0 0.0
        %605 = vmatpush1.msra.mxu0 0.0
        %606 = vmatprep.subr.mxu0 0.0
        %607 = vmatpush1.msra.mxu0 0.0
        %608 = vmatprep.subr.mxu0 0.0
        %609 = vmatpush1.msra.mxu0 0.0
        %610 = vmatprep.subr.mxu0 0.0
        %611 = vmatpush1.msra.mxu0 0.0
        %612 = vmatprep.subr.mxu0 0.0
        %613 = vmatpush1.msra.mxu0 0.0
        %614 = vmatprep.subr.mxu0 0.0
        %615 = vmatpush1.msra.mxu0 0.0
        %616 = vmatprep.subr.mxu0 0.0
        %617 = vmatpush1.msra.mxu0 0.0
        %618 = vmatprep.subr.mxu0 0.0
        %619 = vmatpush1.msra.mxu0 0.0
        %620 = vmatprep.subr.mxu0 0.0
        %621 = vmatpush1.msra.mxu0 0.0
        %622 = vmatprep.subr.mxu0 0.0
        %623 = vmatpush1.msra.mxu0 0.0
        %624 = vmatprep.subr.mxu0 0.0
        %625 = vmatpush1.msra.mxu0 0.0
        %626 = vmatprep.subr.mxu0 0.0
        %627 = vmatpush1.msra.mxu0 0.0
        %628 = vmatprep.subr.mxu0 0.0
        %629 = vmatpush1.msra.mxu0 0.0
        %630 = vmatprep.subr.mxu0 0.0
        %631 = vmatpush1.msra.mxu0 %v506
        %632 = vmatprep.subr.mxu0 0.0
        %633 = vmatpush1.msra.mxu0 %v505
        %634 = vmatprep.subr.mxu0 0.0
        %635 = vmatpush2.msra.mxu0 0.0
        %636 = vmatprep.subr.mxu0 0.0
        %637 = vmatpush2.msra.mxu0 0.0
        %638 = vmatprep.subr.mxu0 0.0
        %639 = vmatpush2.msra.mxu0 0.0
        %640 = vmatprep.subr.mxu0 0.0
        %641 = vmatpush2.msra.mxu0 0.0
        %642 = vmatprep.subr.mxu0 0.0
        %643 = vmatpush2.msra.mxu0 0.0
        %644 = vmatprep.subr.mxu0 0.0
        %645 = vmatpush2.msra.mxu0 0.0
        %646 = vmatprep.subr.mxu0 0.0
        %647 = vmatpush2.msra.mxu0 0.0
        %648 = vmatprep.subr.mxu0 0.0
        %649 = vmatpush2.msra.mxu0 0.0
        %650 = vmatprep.subr.mxu0 0.0
        %651 = vmatpush2.msra.mxu0 0.0
        %652 = vmatprep.subr.mxu0 0.0
        %653 = vmatpush2.msra.mxu0 0.0
        %654 = vmatprep.subr.mxu0 0.0
        %655 = vmatpush2.msra.mxu0 0.0
        %656 = vmatprep.subr.mxu0 0.0
        %657 = vmatpush2.msra.mxu0 0.0
        %658 = vmatprep.subr.mxu0 0.0
        %659 = vmatpush2.msra.mxu0 0.0
        %660 = vmatprep.subr.mxu0 0.0
        %661 = vmatpush2.msra.mxu0 0.0
        %662 = vmatprep.subr.mxu0 0.0
        %663 = vmatpush2.msra.mxu0 0.0
        %664 = vmatprep.subr.mxu0 0.0
        %665 = vmatpush2.msra.mxu0 0.0
        %666 = vmatprep.mubr.f32.mxu0 0.0
        %667 = vmatmul.mubr.f32.gmra.mxu0 %v514
        %v668 = vpop.f32.mrf.mxu0
        %v669 = vadd.f32 0.0, %v668
        %v670 = vpop.f32.mrf.mxu0
        %671 = vmatprep.mubr.f32.mxu0 0.0
        %672 = vmatmul.mubr.f32.gmra.mxu0 %v517
        %v673 = vpop.f32.mrf.mxu0
        %v674 = vadd.f32 0.0, %v673
        %v675 = vpop.f32.mrf.mxu0
        %676 = vmatprep.mubr.f32.mxu0 0.0
        %677 = vmatmul.mubr.f32.gmra.mxu0 %v520
        %v678 = vpop.f32.mrf.mxu0
        %v679 = vadd.f32 0.0, %v678
        %v680 = vpop.f32.mrf.mxu0
        %681 = vdwg.mxu0
        %v682 = vld [vmem:[#allocation2] sm:$0xff]
        %v683 = vld [vmem:[#allocation2 + $0x8] sm:$0xff]
        %685 = vset.pattern.permute.xlu0 0
        %686 = vperm.xlu0 %685, %v500
        %v687 = vpop.permute.xlu0 %686
        %690 = vset.pattern.permute.xlu0 0
        %691 = vperm.xlu0 %690, %v501
        %v692 = vpop.permute.xlu0 %691
        %695 = vset.pattern.permute.xlu0 0
        %696 = vperm.xlu0 %695, %v502
        %v697 = vpop.permute.xlu0 %696
        %v699 = vmul.f32 %v687, %v589
        %v700 = vmul.f32 %v692, %v594
        %v701 = vmul.f32 %v697, %v599
        %vm702 = vcmask 195584
        %v704 = vsel %vm702, %v510, 0
        %v707 = vsel %vm702, %v511, 0
        %709 = vmatprep.subr.mxu0 0.0
        %710 = vmatpush1.msra.mxu0 0.0
        %711 = vmatprep.subr.mxu0 0.0
        %712 = vmatpush1.msra.mxu0 0.0
        %713 = vmatprep.subr.mxu0 0.0
        %714 = vmatpush1.msra.mxu0 0.0
        %715 = vmatprep.subr.mxu0 0.0
        %716 = vmatpush1.msra.mxu0 0.0
        %717 = vmatprep.subr.mxu0 0.0
        %718 = vmatpush1.msra.mxu0 0.0
        %719 = vmatprep.subr.mxu0 0.0
        %720 = vmatpush1.msra.mxu0 0.0
        %721 = vmatprep.subr.mxu0 0.0
        %722 = vmatpush1.msra.mxu0 0.0
        %723 = vmatprep.subr.mxu0 0.0
        %724 = vmatpush1.msra.mxu0 0.0
        %725 = vmatprep.subr.mxu0 0.0
        %726 = vmatpush1.msra.mxu0 0.0
        %727 = vmatprep.subr.mxu0 0.0
        %728 = vmatpush1.msra.mxu0 0.0
        %729 = vmatprep.subr.mxu0 0.0
        %730 = vmatpush1.msra.mxu0 0.0
        %731 = vmatprep.subr.mxu0 0.0
        %732 = vmatpush1.msra.mxu0 0.0
        %733 = vmatprep.subr.mxu0 0.0
        %734 = vmatpush1.msra.mxu0 0.0
        %735 = vmatprep.subr.mxu0 0.0
        %736 = vmatpush1.msra.mxu0 %v701
        %737 = vmatprep.subr.mxu0 0.0
        %738 = vmatpush1.msra.mxu0 %v700
        %739 = vmatprep.subr.mxu0 0.0
        %740 = vmatpush1.msra.mxu0 %v699
        %741 = vmatprep.subr.mxu0 0.0
        %742 = vmatpush2.msra.mxu0 0.0
        %743 = vmatprep.subr.mxu0 0.0
        %744 = vmatpush2.msra.mxu0 0.0
        %745 = vmatprep.subr.mxu0 0.0
        %746 = vmatpush2.msra.mxu0 0.0
        %747 = vmatprep.subr.mxu0 0.0
        %748 = vmatpush2.msra.mxu0 0.0
        %749 = vmatprep.subr.mxu0 0.0
        %750 = vmatpush2.msra.mxu0 0.0
        %751 = vmatprep.subr.mxu0 0.0
        %752 = vmatpush2.msra.mxu0 0.0
        %753 = vmatprep.subr.mxu0 0.0
        %754 = vmatpush2.msra.mxu0 0.0
        %755 = vmatprep.subr.mxu0 0.0
        %756 = vmatpush2.msra.mxu0 0.0
        %757 = vmatprep.subr.mxu0 0.0
        %758 = vmatpush2.msra.mxu0 0.0
        %759 = vmatprep.subr.mxu0 0.0
        %760 = vmatpush2.msra.mxu0 0.0
        %761 = vmatprep.subr.mxu0 0.0
        %762 = vmatpush2.msra.mxu0 0.0
        %763 = vmatprep.subr.mxu0 0.0
        %764 = vmatpush2.msra.mxu0 0.0
        %765 = vmatprep.subr.mxu0 0.0
        %766 = vmatpush2.msra.mxu0 0.0
        %767 = vmatprep.subr.mxu0 0.0
        %768 = vmatpush2.msra.mxu0 0.0
        %769 = vmatprep.subr.mxu0 0.0
        %770 = vmatpush2.msra.mxu0 0.0
        %771 = vmatprep.subr.mxu0 0.0
        %772 = vmatpush2.msra.mxu0 0.0
        %773 = vmatprep.mubr.f32.mxu0 0.0
        %774 = vmatmul.mubr.f32.gmra.mxu0 %v704
        %v775 = vpop.f32.mrf.mxu0
        %v776 = vadd.f32 0.0, %v775
        %v777 = vpop.f32.mrf.mxu0
        %778 = vmatprep.mubr.f32.mxu0 0.0
        %779 = vmatmul.mubr.f32.gmra.mxu0 %v707
        %v780 = vpop.f32.mrf.mxu0
        %v781 = vadd.f32 0.0, %v780
        %v782 = vpop.f32.mrf.mxu0
        %783 = vdwg.mxu0
        %v784 = vadd.f32 %v682, %v776
        %v785 = vadd.f32 %v683, %v781
        %786 = vst [vmem:[#allocation2] sm:$0xff] %v784
        %787 = vst [vmem:[#allocation2 + $0x8] sm:$0xff] %v785
        %p788 = scmp.gt.s32.totalorder %s29, 0
        %s789 = scalar_select %p788, 1, 0
        %s790 = scvt.s32.f32 %s789
        %v791 = vld [vmem:[%s2] sm:$0xff]
        %v792 = vld [vmem:[%s2 + $0x8] sm:$0xff]
        %v793 = vld [vmem:[%s6] sm:$0xff]
        %v794 = vld [vmem:[%s6 + $0x8] sm:$0xff]
        %v795 = vld [vmem:[%s6 + $0x10] sm:$0xff]
        %v796 = vld [vmem:[%s6 + $0x18] sm:$0xff]
        %v797 = vld [vmem:[%s6 + $0x20] sm:$0xff]
        %v798 = vld [vmem:[%s6 + $0x28] sm:$0xff]
        %v799 = vld [vmem:[#allocation3] sm:$0xff]
        %v800 = vld [vmem:[#allocation3 + $0x8] sm:$0xff]
        %v801 = vld [vmem:[#allocation3 + $0x10] sm:$0xff]
        %v802 = vld [vmem:[#allocation3 + $0x18] sm:$0xff]
        %v803 = vld [vmem:[#allocation3 + $0x20] sm:$0xff]
        %v804 = vld [vmem:[#allocation3 + $0x28] sm:$0xff]
        %v805 = vld [vmem:[#allocation3 + $0x30] sm:$0xff]
        %v806 = vld [vmem:[#allocation3 + $0x38] sm:$0xff]
        %v807 = vld [vmem:[#allocation3 + $0x40] sm:$0xff]
        %v808 = vld [vmem:[#allocation3 + $0x48] sm:$0xff]
        %v809 = vld [vmem:[#allocation3 + $0x50] sm:$0xff]
        %v810 = vld [vmem:[#allocation3 + $0x58] sm:$0xff]
        %v811 = vld [vmem:[#allocation3 + $0x60] sm:$0xff]
        %v812 = vld [vmem:[#allocation3 + $0x68] sm:$0xff]
        %v813 = vld [vmem:[#allocation3 + $0x70] sm:$0xff]
        %v814 = vld [vmem:[#allocation3 + $0x78] sm:$0xff]
        %v815 = vld [vmem:[#allocation3 + $0x80] sm:$0xff]
        %v816 = vld [vmem:[#allocation3 + $0x88] sm:$0xff]
        %v817 = vld [vmem:[#allocation3 + $0x90] sm:$0xff]
        %v818 = vld [vmem:[#allocation3 + $0x98] sm:$0xff]
        %v819 = vld [vmem:[#allocation3 + $0xa0] sm:$0xff]
        %v820 = vld [vmem:[#allocation3 + $0xa8] sm:$0xff]
        %v821 = vld [vmem:[#allocation3 + $0xb0] sm:$0xff]
        %v822 = vld [vmem:[#allocation3 + $0xb8] sm:$0xff]
        %v823 = vld [vmem:[#allocation3 + $0xc0] sm:$0xff]
        %v824 = vld [vmem:[#allocation3 + $0xc8] sm:$0xff]
        %v825 = vld [vmem:[#allocation3 + $0xd0] sm:$0xff]
        %v826 = vld [vmem:[#allocation3 + $0xd8] sm:$0xff]
        %v827 = vld [vmem:[#allocation3 + $0xe0] sm:$0xff]
        %v828 = vld [vmem:[#allocation3 + $0xe8] sm:$0xff]
        %v829 = vld [vmem:[#allocation3 + $0xf0] sm:$0xff]
        %v830 = vld [vmem:[#allocation3 + $0xf8] sm:$0xff]
        %v831 = vld [vmem:[#allocation3 + $0x100] sm:$0xff]
        %v832 = vld [vmem:[#allocation3 + $0x108] sm:$0xff]
        %v833 = vld [vmem:[#allocation3 + $0x110] sm:$0xff]
        %v834 = vld [vmem:[#allocation3 + $0x118] sm:$0xff]
        %v835 = vld [vmem:[#allocation3 + $0x120] sm:$0xff]
        %v836 = vld [vmem:[#allocation3 + $0x128] sm:$0xff]
        %v837 = vld [vmem:[#allocation3 + $0x130] sm:$0xff]
        %v838 = vld [vmem:[#allocation3 + $0x138] sm:$0xff]
        %v839 = vld [vmem:[#allocation3 + $0x140] sm:$0xff]
        %v840 = vld [vmem:[#allocation3 + $0x148] sm:$0xff]
        %v841 = vld [vmem:[#allocation3 + $0x150] sm:$0xff]
        %v842 = vld [vmem:[#allocation3 + $0x158] sm:$0xff]
        %v843 = vld [vmem:[#allocation3 + $0x160] sm:$0xff]
        %v844 = vld [vmem:[#allocation3 + $0x168] sm:$0xff]
        %v845 = vld [vmem:[#allocation3 + $0x170] sm:$0xff]
        %v846 = vld [vmem:[#allocation3 + $0x178] sm:$0xff]
        %847 = vmatprep.subr.mxu0 %v845
        %848 = vmatpush1.msra.mxu0 %v844
        %849 = vmatprep.subr.mxu0 %v842
        %850 = vmatpush1.msra.mxu0 %v841
        %851 = vmatprep.subr.mxu0 %v839
        %852 = vmatpush1.msra.mxu0 %v838
        %853 = vmatprep.subr.mxu0 %v836
        %854 = vmatpush1.msra.mxu0 %v835
        %855 = vmatprep.subr.mxu0 %v833
        %856 = vmatpush1.msra.mxu0 %v832
        %857 = vmatprep.subr.mxu0 %v830
        %858 = vmatpush1.msra.mxu0 %v829
        %859 = vmatprep.subr.mxu0 %v827
        %860 = vmatpush1.msra.mxu0 %v826
        %861 = vmatprep.subr.mxu0 %v824
        %862 = vmatpush1.msra.mxu0 %v823
        %863 = vmatprep.subr.mxu0 %v821
        %864 = vmatpush1.msra.mxu0 %v820
        %865 = vmatprep.subr.mxu0 %v818
        %866 = vmatpush1.msra.mxu0 %v817
        %867 = vmatprep.subr.mxu0 %v815
        %868 = vmatpush1.msra.mxu0 %v814
        %869 = vmatprep.subr.mxu0 %v812
        %870 = vmatpush1.msra.mxu0 %v811
        %871 = vmatprep.subr.mxu0 %v809
        %872 = vmatpush1.msra.mxu0 %v808
        %873 = vmatprep.subr.mxu0 %v806
        %874 = vmatpush1.msra.mxu0 %v805
        %875 = vmatprep.subr.mxu0 %v803
        %876 = vmatpush1.msra.mxu0 %v802
        %877 = vmatprep.subr.mxu0 %v800
        %878 = vmatpush1.msra.mxu0 %v799
        %879 = vmatprep.subr.mxu0 0.0
        %880 = vmatpush2.msra.mxu0 0.0
        %881 = vmatprep.subr.mxu0 0.0
        %882 = vmatpush2.msra.mxu0 0.0
        %883 = vmatprep.subr.mxu0 0.0
        %884 = vmatpush2.msra.mxu0 0.0
        %885 = vmatprep.subr.mxu0 0.0
        %886 = vmatpush2.msra.mxu0 0.0
        %887 = vmatprep.subr.mxu0 0.0
        %888 = vmatpush2.msra.mxu0 0.0
        %889 = vmatprep.subr.mxu0 0.0
        %890 = vmatpush2.msra.mxu0 0.0
        %891 = vmatprep.subr.mxu0 0.0
        %892 = vmatpush2.msra.mxu0 0.0
        %893 = vmatprep.subr.mxu0 0.0
        %894 = vmatpush2.msra.mxu0 0.0
        %895 = vmatprep.subr.mxu0 0.0
        %896 = vmatpush2.msra.mxu0 0.0
        %897 = vmatprep.subr.mxu0 0.0
        %898 = vmatpush2.msra.mxu0 0.0
        %899 = vmatprep.subr.mxu0 0.0
        %900 = vmatpush2.msra.mxu0 0.0
        %901 = vmatprep.subr.mxu0 0.0
        %902 = vmatpush2.msra.mxu0 0.0
        %903 = vmatprep.subr.mxu0 0.0
        %904 = vmatpush2.msra.mxu0 0.0
        %905 = vmatprep.subr.mxu0 0.0
        %906 = vmatpush2.msra.mxu0 0.0
        %907 = vmatprep.subr.mxu0 0.0
        %908 = vmatpush2.msra.mxu0 0.0
        %909 = vmatprep.subr.mxu0 0.0
        %910 = vmatpush2.msra.mxu0 0.0
        %911 = vmatprep.mubr.f32.mxu0 0.0
        %912 = vmatmul.mubr.f32.gmra.mxu0 %v784
        %v913 = vpop.f32.mrf.mxu0
        %v914 = vadd.f32 0.0, %v913
        %v915 = vpop.f32.mrf.mxu0
        %v916 = vadd.f32 0.0, %v915
        %917 = vmatprep.mubr.f32.mxu0 0.0
        %918 = vmatmul.mubr.f32.gmra.mxu0 %v785
        %v919 = vpop.f32.mrf.mxu0
        %v920 = vadd.f32 0.0, %v919
        %v921 = vpop.f32.mrf.mxu0
        %v922 = vadd.f32 0.0, %v921
        %923 = vdwg.mxu0
        %924 = vmatprep.subr.mxu0 0.0
        %925 = vmatpush1.msra.mxu0 %v846
        %926 = vmatprep.subr.mxu0 0.0
        %927 = vmatpush1.msra.mxu0 %v843
        %928 = vmatprep.subr.mxu0 0.0
        %929 = vmatpush1.msra.mxu0 %v840
        %930 = vmatprep.subr.mxu0 0.0
        %931 = vmatpush1.msra.mxu0 %v837
        %932 = vmatprep.subr.mxu0 0.0
        %933 = vmatpush1.msra.mxu0 %v834
        %934 = vmatprep.subr.mxu0 0.0
        %935 = vmatpush1.msra.mxu0 %v831
        %936 = vmatprep.subr.mxu0 0.0
        %937 = vmatpush1.msra.mxu0 %v828
        %938 = vmatprep.subr.mxu0 0.0
        %939 = vmatpush1.msra.mxu0 %v825
        %940 = vmatprep.subr.mxu0 0.0
        %941 = vmatpush1.msra.mxu0 %v822
        %942 = vmatprep.subr.mxu0 0.0
        %943 = vmatpush1.msra.mxu0 %v819
        %944 = vmatprep.subr.mxu0 0.0
        %945 = vmatpush1.msra.mxu0 %v816
        %946 = vmatprep.subr.mxu0 0.0
        %947 = vmatpush1.msra.mxu0 %v813
        %948 = vmatprep.subr.mxu0 0.0
        %949 = vmatpush1.msra.mxu0 %v810
        %950 = vmatprep.subr.mxu0 0.0
        %951 = vmatpush1.msra.mxu0 %v807
        %952 = vmatprep.subr.mxu0 0.0
        %953 = vmatpush1.msra.mxu0 %v804
        %954 = vmatprep.subr.mxu0 0.0
        %955 = vmatpush1.msra.mxu0 %v801
        %956 = vmatprep.subr.mxu0 0.0
        %957 = vmatpush2.msra.mxu0 0.0
        %958 = vmatprep.subr.mxu0 0.0
        %959 = vmatpush2.msra.mxu0 0.0
        %960 = vmatprep.subr.mxu0 0.0
        %961 = vmatpush2.msra.mxu0 0.0
        %962 = vmatprep.subr.mxu0 0.0
        %963 = vmatpush2.msra.mxu0 0.0
        %964 = vmatprep.subr.mxu0 0.0
        %965 = vmatpush2.msra.mxu0 0.0
        %966 = vmatprep.subr.mxu0 0.0
        %967 = vmatpush2.msra.mxu0 0.0
        %968 = vmatprep.subr.mxu0 0.0
        %969 = vmatpush2.msra.mxu0 0.0
        %970 = vmatprep.subr.mxu0 0.0
        %971 = vmatpush2.msra.mxu0 0.0
        %972 = vmatprep.subr.mxu0 0.0
        %973 = vmatpush2.msra.mxu0 0.0
        %974 = vmatprep.subr.mxu0 0.0
        %975 = vmatpush2.msra.mxu0 0.0
        %976 = vmatprep.subr.mxu0 0.0
        %977 = vmatpush2.msra.mxu0 0.0
        %978 = vmatprep.subr.mxu0 0.0
        %979 = vmatpush2.msra.mxu0 0.0
        %980 = vmatprep.subr.mxu0 0.0
        %981 = vmatpush2.msra.mxu0 0.0
        %982 = vmatprep.subr.mxu0 0.0
        %983 = vmatpush2.msra.mxu0 0.0
        %984 = vmatprep.subr.mxu0 0.0
        %985 = vmatpush2.msra.mxu0 0.0
        %986 = vmatprep.subr.mxu0 0.0
        %987 = vmatpush2.msra.mxu0 0.0
        %988 = vmatprep.mubr.f32.mxu0 0.0
        %989 = vmatmul.mubr.f32.gmra.mxu0 %v784
        %v990 = vpop.f32.mrf.mxu0
        %v991 = vadd.f32 0.0, %v990
        %v992 = vpop.f32.mrf.mxu0
        %993 = vmatprep.mubr.f32.mxu0 0.0
        %994 = vmatmul.mubr.f32.gmra.mxu0 %v785
        %v995 = vpop.f32.mrf.mxu0
        %v996 = vadd.f32 0.0, %v995
        %v997 = vpop.f32.mrf.mxu0
        %998 = vdwg.mxu0
        %v1000 = vsel %vm512, %v791, 0
        %v1003 = vsel %vm512, %v792, 0
        %1005 = vmatprep.subr.mxu0 0.0
        %1006 = vmatpush1.msra.mxu0 0.0
        %1007 = vmatprep.subr.mxu0 0.0
        %1008 = vmatpush1.msra.mxu0 0.0
        %1009 = vmatprep.subr.mxu0 0.0
        %1010 = vmatpush1.msra.mxu0 0.0
        %1011 = vmatprep.subr.mxu0 0.0
        %1012 = vmatpush1.msra.mxu0 0.0
        %1013 = vmatprep.subr.mxu0 0.0
        %1014 = vmatpush1.msra.mxu0 0.0
        %1015 = vmatprep.subr.mxu0 0.0
        %1016 = vmatpush1.msra.mxu0 0.0
        %1017 = vmatprep.subr.mxu0 0.0
        %1018 = vmatpush1.msra.mxu0 0.0
        %1019 = vmatprep.subr.mxu0 0.0
        %1020 = vmatpush1.msra.mxu0 0.0
        %1021 = vmatprep.subr.mxu0 0.0
        %1022 = vmatpush1.msra.mxu0 0.0
        %1023 = vmatprep.subr.mxu0 0.0
        %1024 = vmatpush1.msra.mxu0 0.0
        %1025 = vmatprep.subr.mxu0 0.0
        %1026 = vmatpush1.msra.mxu0 0.0
        %1027 = vmatprep.subr.mxu0 0.0
        %1028 = vmatpush1.msra.mxu0 0.0
        %1029 = vmatprep.subr.mxu0 0.0
        %1030 = vmatpush1.msra.mxu0 0.0
        %1031 = vmatprep.subr.mxu0 0.0
        %1032 = vmatpush1.msra.mxu0 0.0
        %1033 = vmatprep.subr.mxu0 %v797
        %1034 = vmatpush1.msra.mxu0 %v796
        %1035 = vmatprep.subr.mxu0 %v794
        %1036 = vmatpush1.msra.mxu0 %v793
        %1037 = vmatprep.subr.mxu0 0.0
        %1038 = vmatpush2.msra.mxu0 0.0
        %1039 = vmatprep.subr.mxu0 0.0
        %1040 = vmatpush2.msra.mxu0 0.0
        %1041 = vmatprep.subr.mxu0 0.0
        %1042 = vmatpush2.msra.mxu0 0.0
        %1043 = vmatprep.subr.mxu0 0.0
        %1044 = vmatpush2.msra.mxu0 0.0
        %1045 = vmatprep.subr.mxu0 0.0
        %1046 = vmatpush2.msra.mxu0 0.0
        %1047 = vmatprep.subr.mxu0 0.0
        %1048 = vmatpush2.msra.mxu0 0.0
        %1049 = vmatprep.subr.mxu0 0.0
        %1050 = vmatpush2.msra.mxu0 0.0
        %1051 = vmatprep.subr.mxu0 0.0
        %1052 = vmatpush2.msra.mxu0 0.0
        %1053 = vmatprep.subr.mxu0 0.0
        %1054 = vmatpush2.msra.mxu0 0.0
        %1055 = vmatprep.subr.mxu0 0.0
        %1056 = vmatpush2.msra.mxu0 0.0
        %1057 = vmatprep.subr.mxu0 0.0
        %1058 = vmatpush2.msra.mxu0 0.0
        %1059 = vmatprep.subr.mxu0 0.0
        %1060 = vmatpush2.msra.mxu0 0.0
        %1061 = vmatprep.subr.mxu0 0.0
        %1062 = vmatpush2.msra.mxu0 0.0
        %1063 = vmatprep.subr.mxu0 0.0
        %1064 = vmatpush2.msra.mxu0 0.0
        %1065 = vmatprep.subr.mxu0 0.0
        %1066 = vmatpush2.msra.mxu0 0.0
        %1067 = vmatprep.subr.mxu0 0.0
        %1068 = vmatpush2.msra.mxu0 0.0
        %1069 = vmatprep.mubr.f32.mxu0 0.0
        %1070 = vmatmul.mubr.f32.gmra.mxu0 %v1000
        %v1071 = vpop.f32.mrf.mxu0
        %v1072 = vadd.f32 %v914, %v1071
        %v1073 = vpop.f32.mrf.mxu0
        %v1074 = vadd.f32 %v916, %v1073
        %1075 = vmatprep.mubr.f32.mxu0 0.0
        %1076 = vmatmul.mubr.f32.gmra.mxu0 %v1003
        %v1077 = vpop.f32.mrf.mxu0
        %v1078 = vadd.f32 %v920, %v1077
        %v1079 = vpop.f32.mrf.mxu0
        %v1080 = vadd.f32 %v922, %v1079
        %1081 = vdwg.mxu0
        %1082 = vmatprep.subr.mxu0 0.0
        %1083 = vmatpush1.msra.mxu0 0.0
        %1084 = vmatprep.subr.mxu0 0.0
        %1085 = vmatpush1.msra.mxu0 0.0
        %1086 = vmatprep.subr.mxu0 0.0
        %1087 = vmatpush1.msra.mxu0 0.0
        %1088 = vmatprep.subr.mxu0 0.0
        %1089 = vmatpush1.msra.mxu0 0.0
        %1090 = vmatprep.subr.mxu0 0.0
        %1091 = vmatpush1.msra.mxu0 0.0
        %1092 = vmatprep.subr.mxu0 0.0
        %1093 = vmatpush1.msra.mxu0 0.0
        %1094 = vmatprep.subr.mxu0 0.0
        %1095 = vmatpush1.msra.mxu0 0.0
        %1096 = vmatprep.subr.mxu0 0.0
        %1097 = vmatpush1.msra.mxu0 0.0
        %1098 = vmatprep.subr.mxu0 0.0
        %1099 = vmatpush1.msra.mxu0 0.0
        %1100 = vmatprep.subr.mxu0 0.0
        %1101 = vmatpush1.msra.mxu0 0.0
        %1102 = vmatprep.subr.mxu0 0.0
        %1103 = vmatpush1.msra.mxu0 0.0
        %1104 = vmatprep.subr.mxu0 0.0
        %1105 = vmatpush1.msra.mxu0 0.0
        %1106 = vmatprep.subr.mxu0 0.0
        %1107 = vmatpush1.msra.mxu0 0.0
        %1108 = vmatprep.subr.mxu0 0.0
        %1109 = vmatpush1.msra.mxu0 0.0
        %1110 = vmatprep.subr.mxu0 0.0
        %1111 = vmatpush1.msra.mxu0 %v798
        %1112 = vmatprep.subr.mxu0 0.0
        %1113 = vmatpush1.msra.mxu0 %v795
        %1114 = vmatprep.subr.mxu0 0.0
        %1115 = vmatpush2.msra.mxu0 0.0
        %1116 = vmatprep.subr.mxu0 0.0
        %1117 = vmatpush2.msra.mxu0 0.0
        %1118 = vmatprep.subr.mxu0 0.0
        %1119 = vmatpush2.msra.mxu0 0.0
        %1120 = vmatprep.subr.mxu0 0.0
        %1121 = vmatpush2.msra.mxu0 0.0
        %1122 = vmatprep.subr.mxu0 0.0
        %1123 = vmatpush2.msra.mxu0 0.0
        %1124 = vmatprep.subr.mxu0 0.0
        %1125 = vmatpush2.msra.mxu0 0.0
        %1126 = vmatprep.subr.mxu0 0.0
        %1127 = vmatpush2.msra.mxu0 0.0
        %1128 = vmatprep.subr.mxu0 0.0
        %1129 = vmatpush2.msra.mxu0 0.0
        %1130 = vmatprep.subr.mxu0 0.0
        %1131 = vmatpush2.msra.mxu0 0.0
        %1132 = vmatprep.subr.mxu0 0.0
        %1133 = vmatpush2.msra.mxu0 0.0
        %1134 = vmatprep.subr.mxu0 0.0
        %1135 = vmatpush2.msra.mxu0 0.0
        %1136 = vmatprep.subr.mxu0 0.0
        %1137 = vmatpush2.msra.mxu0 0.0
        %1138 = vmatprep.subr.mxu0 0.0
        %1139 = vmatpush2.msra.mxu0 0.0
        %1140 = vmatprep.subr.mxu0 0.0
        %1141 = vmatpush2.msra.mxu0 0.0
        %1142 = vmatprep.subr.mxu0 0.0
        %1143 = vmatpush2.msra.mxu0 0.0
        %1144 = vmatprep.subr.mxu0 0.0
        %1145 = vmatpush2.msra.mxu0 0.0
        %1146 = vmatprep.mubr.f32.mxu0 0.0
        %1147 = vmatmul.mubr.f32.gmra.mxu0 %v1000
        %v1148 = vpop.f32.mrf.mxu0
        %v1149 = vadd.f32 %v991, %v1148
        %v1150 = vpop.f32.mrf.mxu0
        %1151 = vmatprep.mubr.f32.mxu0 0.0
        %1152 = vmatmul.mubr.f32.gmra.mxu0 %v1003
        %v1153 = vpop.f32.mrf.mxu0
        %v1154 = vadd.f32 %v996, %v1153
        %v1155 = vpop.f32.mrf.mxu0
        %1156 = vdwg.mxu0
        %v1157 = vld [vmem:[%s8] sm:$0x7]
        %v1159 = vlaneseq
        %v1160 = vshrl.u32 %v1159, 7
        %v1161 = vsub.s32 0, %v1160
        %v1162 = vrot.slane %v1157, %v1161
        %v1163 = vlaneseq
        %v1164 = vshrl.u32 %v1163, 7
        %v1165 = vsub.s32 1, %v1164
        %v1166 = vrot.slane %v1157, %v1165
        %v1167 = vlaneseq
        %v1168 = vshrl.u32 %v1167, 7
        %v1169 = vsub.s32 2, %v1168
        %v1170 = vrot.slane %v1157, %v1169
        %v1174 = vadd.f32 %v1072, %v1162
        %v1175 = vadd.f32 %v1074, %v1166
        %v1176 = vadd.f32 %v1149, %v1170
        %v1177 = vadd.f32 %v1078, %v1162
        %v1178 = vadd.f32 %v1080, %v1166
        %v1179 = vadd.f32 %v1154, %v1170
        %v1180 = vld [vmem:[%s9] sm:$0x7]
        %v1181 = vstv %s790
        %v1182 = vmul.f32 %v1181, %v1180
        %v1184 = vlaneseq
        %v1185 = vshrl.u32 %v1184, 7
        %v1186 = vsub.s32 0, %v1185
        %v1187 = vrot.slane %v1182, %v1186
        %v1188 = vlaneseq
        %v1189 = vshrl.u32 %v1188, 7
        %v1190 = vsub.s32 1, %v1189
        %v1191 = vrot.slane %v1182, %v1190
        %v1192 = vlaneseq
        %v1193 = vshrl.u32 %v1192, 7
        %v1194 = vsub.s32 2, %v1193
        %v1195 = vrot.slane %v1182, %v1194
        %v1199 = vadd.f32 %v1174, %v1187
        %v1200 = vadd.f32 %v1175, %v1191
        %v1201 = vadd.f32 %v1176, %v1195
        %v1202 = vadd.f32 %v1177, %v1187
        %v1203 = vadd.f32 %v1178, %v1191
        %v1204 = vadd.f32 %v1179, %v1195
        %v1205 = vxor.u32 %v1199, 2147483648
        %v1206 = vxor.u32 %v1202, 2147483648
        %v1207 = vmul.f32 %v1205, 1.442695
        %v1208 = vpow.pop %v1207
        %v1209 = vmul.f32 %v1206, 1.442695
        %v1210 = vpow.pop %v1209
        %v1211 = vadd.f32 %v1208, 1.0
        %v1212 = vadd.f32 %v1210, 1.0
        %v1213 = vrcp.pop %v1211
        %v1214 = vmul.f32 1.0, %v1213
        %v1215 = vrcp.pop %v1212
        %v1216 = vmul.f32 1.0, %v1215
        %v1217 = vxor.u32 %v1200, 2147483648
        %v1218 = vxor.u32 %v1203, 2147483648
        %v1219 = vmul.f32 %v1217, 1.442695
        %v1220 = vpow.pop %v1219
        %v1221 = vmul.f32 %v1218, 1.442695
        %v1222 = vpow.pop %v1221
        %v1223 = vadd.f32 %v1220, 1.0
        %v1224 = vadd.f32 %v1222, 1.0
        %v1225 = vrcp.pop %v1223
        %v1226 = vmul.f32 1.0, %v1225
        %v1227 = vrcp.pop %v1224
        %v1228 = vmul.f32 1.0, %v1227
        %v1229 = vtanh.pop %v1201
        %v1230 = vtanh.pop %v1204
        %v1231 = vmul.f32 %v1214, %v1229
        %v1232 = vmul.f32 %v1216, %v1230
        %1234 = vset.pattern.permute.xlu0 0
        %1235 = vperm.xlu0 %1234, %v498
        %v1236 = vpop.permute.xlu0 %1235
        %1239 = vset.pattern.permute.xlu0 0
        %1240 = vperm.xlu0 %1239, %v499
        %v1241 = vpop.permute.xlu0 %1240
        %v1243 = vmul.f32 %v1236, %v1231
        %v1244 = vmul.f32 %v1241, %v1232
        %v1245 = vsub.f32 1.0, %v498
        %v1246 = vsub.f32 1.0, %v499
        %1248 = vset.pattern.permute.xlu0 0
        %1249 = vperm.xlu0 %1248, %v1245
        %v1250 = vpop.permute.xlu0 %1249
        %1253 = vset.pattern.permute.xlu0 0
        %1254 = vperm.xlu0 %1253, %v1246
        %v1255 = vpop.permute.xlu0 %1254
        %v1257 = vmul.f32 %v1250, %v505
        %v1258 = vmul.f32 %v1255, %v506
        %v1259 = vadd.f32 %v1243, %v1257
        %v1260 = vadd.f32 %v1244, %v1258
        %v1261 = vld [vmem:[%s3] sm:$0xff]
        %v1262 = vld [vmem:[%s3 + $0x8] sm:$0xff]
        %v1263 = vld [vmem:[%s3 + $0x10] sm:$0xff]
        %v1264 = vld [vmem:[%s10] sm:$0xff]
        %v1265 = vld [vmem:[%s10 + $0x8] sm:$0xff]
        %v1266 = vld [vmem:[%s11] sm:$0xff]
        %v1267 = vld [vmem:[%s11 + $0x8] sm:$0xff]
        %v1268 = vld [vmem:[%s11 + $0x10] sm:$0xff]
        %v1269 = vld [vmem:[%s11 + $0x18] sm:$0xff]
        %v1270 = vld [vmem:[%s11 + $0x20] sm:$0xff]
        %v1271 = vld [vmem:[%s11 + $0x28] sm:$0xff]
        %v1272 = vld [vmem:[%s11 + $0x30] sm:$0xff]
        %v1273 = vld [vmem:[%s11 + $0x38] sm:$0xff]
        %v1274 = vld [vmem:[%s11 + $0x40] sm:$0xff]
        %v1275 = vld [vmem:[%s11 + $0x48] sm:$0xff]
        %v1276 = vld [vmem:[%s11 + $0x50] sm:$0xff]
        %v1277 = vld [vmem:[%s11 + $0x58] sm:$0xff]
        %v1278 = vld [vmem:[%s11 + $0x60] sm:$0xff]
        %v1279 = vld [vmem:[%s11 + $0x68] sm:$0xff]
        %v1280 = vld [vmem:[%s11 + $0x70] sm:$0xff]
        %v1281 = vld [vmem:[%s11 + $0x78] sm:$0xff]
        %1282 = vmatprep.subr.mxu0 0.0
        %1283 = vmatpush1.msra.mxu0 %v1281
        %1284 = vmatprep.subr.mxu0 0.0
        %1285 = vmatpush1.msra.mxu0 %v1280
        %1286 = vmatprep.subr.mxu0 0.0
        %1287 = vmatpush1.msra.mxu0 %v1279
        %1288 = vmatprep.subr.mxu0 0.0
        %1289 = vmatpush1.msra.mxu0 %v1278
        %1290 = vmatprep.subr.mxu0 0.0
        %1291 = vmatpush1.msra.mxu0 %v1277
        %1292 = vmatprep.subr.mxu0 0.0
        %1293 = vmatpush1.msra.mxu0 %v1276
        %1294 = vmatprep.subr.mxu0 0.0
        %1295 = vmatpush1.msra.mxu0 %v1275
        %1296 = vmatprep.subr.mxu0 0.0
        %1297 = vmatpush1.msra.mxu0 %v1274
        %1298 = vmatprep.subr.mxu0 0.0
        %1299 = vmatpush1.msra.mxu0 %v1273
        %1300 = vmatprep.subr.mxu0 0.0
        %1301 = vmatpush1.msra.mxu0 %v1272
        %1302 = vmatprep.subr.mxu0 0.0
        %1303 = vmatpush1.msra.mxu0 %v1271
        %1304 = vmatprep.subr.mxu0 0.0
        %1305 = vmatpush1.msra.mxu0 %v1270
        %1306 = vmatprep.subr.mxu0 0.0
        %1307 = vmatpush1.msra.mxu0 %v1269
        %1308 = vmatprep.subr.mxu0 0.0
        %1309 = vmatpush1.msra.mxu0 %v1268
        %1310 = vmatprep.subr.mxu0 0.0
        %1311 = vmatpush1.msra.mxu0 %v1267
        %1312 = vmatprep.subr.mxu0 0.0
        %1313 = vmatpush1.msra.mxu0 %v1266
        %1314 = vmatprep.subr.mxu0 0.0
        %1315 = vmatpush2.msra.mxu0 0.0
        %1316 = vmatprep.subr.mxu0 0.0
        %1317 = vmatpush2.msra.mxu0 0.0
        %1318 = vmatprep.subr.mxu0 0.0
        %1319 = vmatpush2.msra.mxu0 0.0
        %1320 = vmatprep.subr.mxu0 0.0
        %1321 = vmatpush2.msra.mxu0 0.0
        %1322 = vmatprep.subr.mxu0 0.0
        %1323 = vmatpush2.msra.mxu0 0.0
        %1324 = vmatprep.subr.mxu0 0.0
        %1325 = vmatpush2.msra.mxu0 0.0
        %1326 = vmatprep.subr.mxu0 0.0
        %1327 = vmatpush2.msra.mxu0 0.0
        %1328 = vmatprep.subr.mxu0 0.0
        %1329 = vmatpush2.msra.mxu0 0.0
        %1330 = vmatprep.subr.mxu0 0.0
        %1331 = vmatpush2.msra.mxu0 0.0
        %1332 = vmatprep.subr.mxu0 0.0
        %1333 = vmatpush2.msra.mxu0 0.0
        %1334 = vmatprep.subr.mxu0 0.0
        %1335 = vmatpush2.msra.mxu0 0.0
        %1336 = vmatprep.subr.mxu0 0.0
        %1337 = vmatpush2.msra.mxu0 0.0
        %1338 = vmatprep.subr.mxu0 0.0
        %1339 = vmatpush2.msra.mxu0 0.0
        %1340 = vmatprep.subr.mxu0 0.0
        %1341 = vmatpush2.msra.mxu0 0.0
        %1342 = vmatprep.subr.mxu0 0.0
        %1343 = vmatpush2.msra.mxu0 0.0
        %1344 = vmatprep.subr.mxu0 0.0
        %1345 = vmatpush2.msra.mxu0 0.0
        %1346 = vmatprep.mubr.f32.mxu0 0.0
        %1347 = vmatmul.mubr.f32.gmra.mxu0 %v589
        %v1348 = vpop.f32.mrf.mxu0
        %v1349 = vadd.f32 0.0, %v1348
        %v1350 = vpop.f32.mrf.mxu0
        %1351 = vmatprep.mubr.f32.mxu0 0.0
        %1352 = vmatmul.mubr.f32.gmra.mxu0 %v594
        %v1353 = vpop.f32.mrf.mxu0
        %v1354 = vadd.f32 0.0, %v1353
        %v1355 = vpop.f32.mrf.mxu0
        %1356 = vmatprep.mubr.f32.mxu0 0.0
        %1357 = vmatmul.mubr.f32.gmra.mxu0 %v599
        %v1358 = vpop.f32.mrf.mxu0
        %v1359 = vadd.f32 0.0, %v1358
        %v1360 = vpop.f32.mrf.mxu0
        %1361 = vdwg.mxu0
        %v1363 = vsel %vm512, %v1261, 0
        %v1366 = vsel %vm512, %v1262, 0
        %v1369 = vsel %vm512, %v1263, 0
        %1371 = vmatprep.subr.mxu0 0.0
        %1372 = vmatpush1.msra.mxu0 0.0
        %1373 = vmatprep.subr.mxu0 0.0
        %1374 = vmatpush1.msra.mxu0 0.0
        %1375 = vmatprep.subr.mxu0 0.0
        %1376 = vmatpush1.msra.mxu0 0.0
        %1377 = vmatprep.subr.mxu0 0.0
        %1378 = vmatpush1.msra.mxu0 0.0
        %1379 = vmatprep.subr.mxu0 0.0
        %1380 = vmatpush1.msra.mxu0 0.0
        %1381 = vmatprep.subr.mxu0 0.0
        %1382 = vmatpush1.msra.mxu0 0.0
        %1383 = vmatprep.subr.mxu0 0.0
        %1384 = vmatpush1.msra.mxu0 0.0
        %1385 = vmatprep.subr.mxu0 0.0
        %1386 = vmatpush1.msra.mxu0 0.0
        %1387 = vmatprep.subr.mxu0 0.0
        %1388 = vmatpush1.msra.mxu0 0.0
        %1389 = vmatprep.subr.mxu0 0.0
        %1390 = vmatpush1.msra.mxu0 0.0
        %1391 = vmatprep.subr.mxu0 0.0
        %1392 = vmatpush1.msra.mxu0 0.0
        %1393 = vmatprep.subr.mxu0 0.0
        %1394 = vmatpush1.msra.mxu0 0.0
        %1395 = vmatprep.subr.mxu0 0.0
        %1396 = vmatpush1.msra.mxu0 0.0
        %1397 = vmatprep.subr.mxu0 0.0
        %1398 = vmatpush1.msra.mxu0 0.0
        %1399 = vmatprep.subr.mxu0 0.0
        %1400 = vmatpush1.msra.mxu0 %v1265
        %1401 = vmatprep.subr.mxu0 0.0
        %1402 = vmatpush1.msra.mxu0 %v1264
        %1403 = vmatprep.subr.mxu0 0.0
        %1404 = vmatpush2.msra.mxu0 0.0
        %1405 = vmatprep.subr.mxu0 0.0
        %1406 = vmatpush2.msra.mxu0 0.0
        %1407 = vmatprep.subr.mxu0 0.0
        %1408 = vmatpush2.msra.mxu0 0.0
        %1409 = vmatprep.subr.mxu0 0.0
        %1410 = vmatpush2.msra.mxu0 0.0
        %1411 = vmatprep.subr.mxu0 0.0
        %1412 = vmatpush2.msra.mxu0 0.0
        %1413 = vmatprep.subr.mxu0 0.0
        %1414 = vmatpush2.msra.mxu0 0.0
        %1415 = vmatprep.subr.mxu0 0.0
        %1416 = vmatpush2.msra.mxu0 0.0
        %1417 = vmatprep.subr.mxu0 0.0
        %1418 = vmatpush2.msra.mxu0 0.0
        %1419 = vmatprep.subr.mxu0 0.0
        %1420 = vmatpush2.msra.mxu0 0.0
        %1421 = vmatprep.subr.mxu0 0.0
        %1422 = vmatpush2.msra.mxu0 0.0
        %1423 = vmatprep.subr.mxu0 0.0
        %1424 = vmatpush2.msra.mxu0 0.0
        %1425 = vmatprep.subr.mxu0 0.0
        %1426 = vmatpush2.msra.mxu0 0.0
        %1427 = vmatprep.subr.mxu0 0.0
        %1428 = vmatpush2.msra.mxu0 0.0
        %1429 = vmatprep.subr.mxu0 0.0
        %1430 = vmatpush2.msra.mxu0 0.0
        %1431 = vmatprep.subr.mxu0 0.0
        %1432 = vmatpush2.msra.mxu0 0.0
        %1433 = vmatprep.subr.mxu0 0.0
        %1434 = vmatpush2.msra.mxu0 0.0
        %1435 = vmatprep.mubr.f32.mxu0 0.0
        %1436 = vmatmul.mubr.f32.gmra.mxu0 %v1363
        %v1437 = vpop.f32.mrf.mxu0
        %v1438 = vadd.f32 %v1349, %v1437
        %v1439 = vpop.f32.mrf.mxu0
        %1440 = vmatprep.mubr.f32.mxu0 0.0
        %1441 = vmatmul.mubr.f32.gmra.mxu0 %v1366
        %v1442 = vpop.f32.mrf.mxu0
        %v1443 = vadd.f32 %v1354, %v1442
        %v1444 = vpop.f32.mrf.mxu0
        %1445 = vmatprep.mubr.f32.mxu0 0.0
        %1446 = vmatmul.mubr.f32.gmra.mxu0 %v1369
        %v1447 = vpop.f32.mrf.mxu0
        %v1448 = vadd.f32 %v1359, %v1447
        %v1449 = vpop.f32.mrf.mxu0
        %1450 = vdwg.mxu0
        %v1451 = vld [vmem:[%s12] sm:$0x1]
        %v1453 = vlaneseq
        %v1454 = vshrl.u32 %v1453, 7
        %v1455 = vsub.s32 0, %v1454
        %v1456 = vrot.slane %v1451, %v1455
        %v1458 = vadd.f32 %v1438, %v1456
        %v1459 = vadd.f32 %v1443, %v1456
        %v1460 = vadd.f32 %v1448, %v1456
        %v1461 = vxor.u32 %v1458, 2147483648
        %v1462 = vxor.u32 %v1459, 2147483648
        %v1463 = vxor.u32 %v1460, 2147483648
        %v1464 = vmul.f32 %v1461, 1.442695
        %v1465 = vpow.pop %v1464
        %v1466 = vmul.f32 %v1462, 1.442695
        %v1467 = vpow.pop %v1466
        %v1468 = vmul.f32 %v1463, 1.442695
        %v1469 = vpow.pop %v1468
        %v1470 = vadd.f32 %v1465, 1.0
        %v1471 = vadd.f32 %v1467, 1.0
        %v1472 = vadd.f32 %v1469, 1.0
        %v1473 = vrcp.pop %v1470
        %v1474 = vmul.f32 1.0, %v1473
        %v1475 = vrcp.pop %v1471
        %v1476 = vmul.f32 1.0, %v1475
        %v1477 = vrcp.pop %v1472
        %v1478 = vmul.f32 1.0, %v1477
        %v1479 = vmul.f32 %v1474, %v669
        %v1480 = vmul.f32 %v1476, %v674
        %v1481 = vmul.f32 %v1478, %v679
        %v1482 = vmul.f32 %v687, %v1479
        %v1483 = vmul.f32 %v692, %v1480
        %v1484 = vmul.f32 %v697, %v1481
        %1485 = vmatprep.subr.mxu0 0.0
        %1486 = vmatpush1.msra.mxu0 0.0
        %1487 = vmatprep.subr.mxu0 0.0
        %1488 = vmatpush1.msra.mxu0 0.0
        %1489 = vmatprep.subr.mxu0 0.0
        %1490 = vmatpush1.msra.mxu0 0.0
        %1491 = vmatprep.subr.mxu0 0.0
        %1492 = vmatpush1.msra.mxu0 0.0
        %1493 = vmatprep.subr.mxu0 0.0
        %1494 = vmatpush1.msra.mxu0 0.0
        %1495 = vmatprep.subr.mxu0 0.0
        %1496 = vmatpush1.msra.mxu0 0.0
        %1497 = vmatprep.subr.mxu0 0.0
        %1498 = vmatpush1.msra.mxu0 0.0
        %1499 = vmatprep.subr.mxu0 0.0
        %1500 = vmatpush1.msra.mxu0 0.0
        %1501 = vmatprep.subr.mxu0 0.0
        %1502 = vmatpush1.msra.mxu0 0.0
        %1503 = vmatprep.subr.mxu0 0.0
        %1504 = vmatpush1.msra.mxu0 0.0
        %1505 = vmatprep.subr.mxu0 0.0
        %1506 = vmatpush1.msra.mxu0 0.0
        %1507 = vmatprep.subr.mxu0 0.0
        %1508 = vmatpush1.msra.mxu0 0.0
        %1509 = vmatprep.subr.mxu0 0.0
        %1510 = vmatpush1.msra.mxu0 0.0
        %1511 = vmatprep.subr.mxu0 0.0
        %1512 = vmatpush1.msra.mxu0 %v1484
        %1513 = vmatprep.subr.mxu0 0.0
        %1514 = vmatpush1.msra.mxu0 %v1483
        %1515 = vmatprep.subr.mxu0 0.0
        %1516 = vmatpush1.msra.mxu0 %v1482
        %1517 = vmatprep.subr.mxu0 0.0
        %1518 = vmatpush2.msra.mxu0 0.0
        %1519 = vmatprep.subr.mxu0 0.0
        %1520 = vmatpush2.msra.mxu0 0.0
        %1521 = vmatprep.subr.mxu0 0.0
        %1522 = vmatpush2.msra.mxu0 0.0
        %1523 = vmatprep.subr.mxu0 0.0
        %1524 = vmatpush2.msra.mxu0 0.0
        %1525 = vmatprep.subr.mxu0 0.0
        %1526 = vmatpush2.msra.mxu0 0.0
        %1527 = vmatprep.subr.mxu0 0.0
        %1528 = vmatpush2.msra.mxu0 0.0
        %1529 = vmatprep.subr.mxu0 0.0
        %1530 = vmatpush2.msra.mxu0 0.0
        %1531 = vmatprep.subr.mxu0 0.0
        %1532 = vmatpush2.msra.mxu0 0.0
        %1533 = vmatprep.subr.mxu0 0.0
        %1534 = vmatpush2.msra.mxu0 0.0
        %1535 = vmatprep.subr.mxu0 0.0
        %1536 = vmatpush2.msra.mxu0 0.0
        %1537 = vmatprep.subr.mxu0 0.0
        %1538 = vmatpush2.msra.mxu0 0.0
        %1539 = vmatprep.subr.mxu0 0.0
        %1540 = vmatpush2.msra.mxu0 0.0
        %1541 = vmatprep.subr.mxu0 0.0
        %1542 = vmatpush2.msra.mxu0 0.0
        %1543 = vmatprep.subr.mxu0 0.0
        %1544 = vmatpush2.msra.mxu0 0.0
        %1545 = vmatprep.subr.mxu0 0.0
        %1546 = vmatpush2.msra.mxu0 0.0
        %1547 = vmatprep.subr.mxu0 0.0
        %1548 = vmatpush2.msra.mxu0 0.0
        %1549 = vmatprep.mubr.f32.mxu0 0.0
        %1550 = vmatmul.mubr.f32.gmra.mxu0 %v704
        %v1551 = vpop.f32.mrf.mxu0
        %v1552 = vadd.f32 0.0, %v1551
        %v1553 = vpop.f32.mrf.mxu0
        %1554 = vmatprep.mubr.f32.mxu0 0.0
        %1555 = vmatmul.mubr.f32.gmra.mxu0 %v707
        %v1556 = vpop.f32.mrf.mxu0
        %v1557 = vadd.f32 0.0, %v1556
        %v1558 = vpop.f32.mrf.mxu0
        %1559 = vdwg.mxu0
        %v1560 = vadd.f32 %v1259, %v1552
        %v1561 = vadd.f32 %v1260, %v1557
        %1562 = vst [vmem:[#allocation7] sm:$0xff] %v1560
        %1563 = vst [vmem:[#allocation7 + $0x8] sm:$0xff] %v1561
        %v1564 = vtanh.pop %v1560
        %v1565 = vtanh.pop %v1561
        %v1566 = vmul.f32 %v1226, %v1564
        %v1567 = vmul.f32 %v1228, %v1565
        %v1568 = vmul.f32 %v1236, %v1566
        %v1569 = vmul.f32 %v1241, %v1567
        %v1570 = vmul.f32 %v1250, %v503
        %v1571 = vmul.f32 %v1255, %v504
        %v1572 = vadd.f32 %v1568, %v1570
        %v1573 = vadd.f32 %v1569, %v1571
        %1574 = vst [vmem:[#allocation6] sm:$0xff] %v1572
        %1575 = vst [vmem:[#allocation6 + $0x8] sm:$0xff] %v1573
        // Predicated region
        $region81: #{tpu_custom_call.1} parent=71 // pred_check
          %p1576 = pneg %p325
        $region82: #{tpu_custom_call.1} parent=71 // pred_check_branch
          %1578 = sbr.rel (%p1576) target = $region84
        $region83: #{tpu_custom_call.1} parent=71 // pred_region
          %s1580 = ssub.s32 256, 256
          %1581 = vsyncadd [#allocation5], %s1580
          %s1582 = sshll.u32 [#allocation6], 4
          %s1583 = int_to_ptr.vmem [resolvable:$true] %s1582
          %1588 = dma.vmem_to_hbm [thread:$0]  %s1583, 256, %s13, [#allocation5], 128, 128, 8
        $region84: #{tpu_custom_call.1} parent=71 // pred_fallthru
          _
        // Predicated region
        $region85: #{tpu_custom_call.1} parent=71 // pred_check
          %p1589 = pneg %p346
        $region86: #{tpu_custom_call.1} parent=71 // pred_check_branch
          %1591 = sbr.rel (%p1589) target = $region88
        $region87: #{tpu_custom_call.1} parent=71 // pred_region
          %s1593 = ssub.s32 256, 256
          %1594 = vsyncadd [#allocation8], %s1593
          %s1595 = sshll.u32 [#allocation7], 4
          %s1596 = int_to_ptr.vmem [resolvable:$true] %s1595
          %1601 = dma.vmem_to_hbm [thread:$0]  %s1596, 256, %s14, [#allocation8], 128, 128, 8
        $region88: #{tpu_custom_call.1} parent=71 // pred_fallthru
          _
        // Predicated region
        $region89: #{tpu_custom_call.1} parent=71 // pred_check
          %p1602 = pneg %p325
        $region90: #{tpu_custom_call.1} parent=71 // pred_check_branch
          %1604 = sbr.rel (%p1602) target = $region92
        $region91: #{tpu_custom_call.1} parent=71 // pred_region
          %1605 = dma.done [#allocation5], 256
        $region92: #{tpu_custom_call.1} parent=71 // pred_fallthru
          _
        // Predicated region
        $region93: #{tpu_custom_call.1} parent=71 // pred_check
          %p1606 = pneg %p346
        $region94: #{tpu_custom_call.1} parent=71 // pred_check_branch
          %1608 = sbr.rel (%p1606) target = $region96
        $region95: #{tpu_custom_call.1} parent=71 // pred_region
          %1609 = dma.done [#allocation8], 256
        $region96: #{tpu_custom_call.1} parent=71 // pred_fallthru
          _
      $region72: #{tpu_custom_call.1} parent=5 // pred_fallthru
        _
      %p1610 = scmp.le.s32.totalorder 2, %s24
      // Predicated region
      $region97: #{tpu_custom_call.1} parent=5 // pred_check
        %p1611 = pneg %p1610
      $region98: #{tpu_custom_call.1} parent=5 // pred_check_branch
        %1613 = sbr.rel (%p1611) target = $region100
      $region99: #{tpu_custom_call.1} parent=5 // pred_region
        %s1614 = ssub.s32 %s24, 2
      $region100: #{tpu_custom_call.1} parent=5 // pred_fallthru
        _
    $region6: #{tpu_custom_call.1} parent=1 // loop_footer
      %s28 = sadd.s32 1, %s24
    $region7: #{tpu_custom_call.1} parent=1 // loop_footer_branch
      %23 = sbr.rel target = $region3
    $region8: #{tpu_custom_call.1} parent=1 // loop_exit
      _
    %1615 = vsyncpa [#allocation4], 1
    %s1616 = scalar_lea.sflag [#allocation4], 1
    %1617 = vsyncpa %s1616, 1
    %1618 = vsyncpa [#allocation5], 1
    %s1619 = scalar_lea.sflag [#allocation5], 1
    %1620 = vsyncpa %s1619, 1
    %1621 = vsyncpa [#allocation8], 1

</llo_original>
